<compile_context>
chip_gen: v5e
topology: v5e:2x2
jax: 0.10.0
libtpu: 0.0.40
codegen_flags: <defaults>
</compile_context>

<pallas_src>
import functools
import numpy as np
import jax
import jax.numpy as jnp
from jax.experimental import pallas as pl
from jax.experimental.pallas import tpu as pltpu


def _relative_position_index(window_size):
    """Exact reproduction of the nnFormer index construction (incl. its quirk
    of using window_size[1] for the first two strides)."""
    Ws, Wh, Ww = window_size
    coords = np.stack(np.meshgrid(np.arange(Ws), np.arange(Wh), np.arange(Ww),
                                  indexing="ij"))                    # (3, Ws, Wh, Ww)
    coords_flatten = coords.reshape(3, -1)                           # (3, N)
    rel = coords_flatten[:, :, None] - coords_flatten[:, None, :]    # (3, N, N)
    rel = rel.transpose(1, 2, 0).astype(np.int64)                    # (N, N, 3)
    rel[:, :, 0] += Ws - 1
    rel[:, :, 1] += Wh - 1
    rel[:, :, 2] += Ww - 1
    rel[:, :, 0] *= 3 * Wh - 1                                       # quirk kept as-is
    rel[:, :, 1] *= 2 * Wh - 1
    return rel.sum(-1)                                               # (N, N)


def _tpu_config():
    """Generation-aware knobs: exp dtype, megacore preference, VMEM budgets."""
    try:
        kind = jax.devices()[0].device_kind.lower()
    except Exception:
        kind = ""
    is_v7 = ("v7" in kind) or ("7x" in kind)
    # bf16 EUP exists on v6e/v7x; v5e (and older) keep f32 exp.
    use_bf16_exp = any(t in kind for t in ("v6", "v7", "7x"))
    vmem_cap = None
    try:
        info = pltpu.get_tpu_info()
        for attr in ("vmem_capacity_bytes", "vmem_size_bytes", "vmem_bytes"):
            v = getattr(info, attr, None)
            if v:
                vmem_cap = int(v)
                break
    except Exception:
        vmem_cap = None
    if vmem_cap is None:
        vmem_cap = (64 if is_v7 else 128) * 2 ** 20
    if vmem_cap <= 64 * 2 ** 20:          # v7x-class: 64 MiB per TensorCore
        budget, limit = 40 * 2 ** 20, 48 * 2 ** 20
    else:                                  # v5e / v6e: 128 MiB
        budget, limit = 72 * 2 ** 20, 96 * 2 ** 20
    return {"use_bf16_exp": use_bf16_exp, "prefer_even_grid": is_v7,
            "vmem_budget": budget, "vmem_limit": limit}


def _choose_window_batch(B_, N, C, H, nW, vmem_budget_bytes, prefer_even_grid,
                         has_pos=True):
    """Pick how many windows (WB) to process per grid step.

    WB must divide B_; with a mask it must also satisfy (WB % nW == 0) or
    (nW % WB == 0) so one block either sees the whole (nW,N,N) mask table or
    a contiguous slab of it."""
    def fits(wb):
        m = wb * N
        streamed = 2 * (2 * m * C * 2 + m * C * 4)   # skip+q (bf16) + out (f32), 2x buffered
        if has_pos:
            streamed += 2 * m * C * 2                # pos (bf16), 2x buffered
        invariant = (2 * C * C + C * C) * 2 + 3 * C * 4 + H * N * N * 4
        if nW is not None:
            invariant += 2 * max(wb, nW) * N * N * 4
        temps = 4 * m * C * 4 + m * 2 * C * 2 + 3 * wb * N * N * 4
        return streamed + invariant + temps <= vmem_budget_bytes

    cands = [wb for wb in range(1, B_ + 1)
             if B_ % wb == 0
             and (nW is None or wb % nW == 0 or nW % wb == 0)
             and fits(wb)]
    if not cands:
        return 1
    if prefer_even_grid:
        # v7x: both TensorCores get equal work when the grid extent is even.
        even = [wb for wb in cands if (B_ // wb) >= 2 and (B_ // wb) % 2 == 0]
        if even:
            return max(even)
    return max(cands)   # v5e/v6e (single TC): largest window batch that fits


def _window_attn_kv_kernel(skip_ref, q_ref, kvw_ref, kvb_ref, projw_ref,
                           projb_ref, bias_ref, *rest, num_heads, has_pos,
                           has_mask, mask_repeat, exp_dtype):
    idx = 0
    pos_ref = mask_ref = None
    if has_pos:
        pos_ref = rest[idx]; idx += 1
    if has_mask:
        mask_ref = rest[idx]; idx += 1
    o_ref = rest[idx]

    WB, N, C = skip_ref.shape
    H = num_heads
    D = C // H
    M = WB * N
    cdt = skip_ref.dtype                                      # bf16 compute dtype

    # kv = Linear(C -> 2C)(skip), flattened over the window batch -> one MXU
    # matmul (WB*N, C) @ (C, 2C), f32 accumulation.  The qk scale is already
    # folded into the k-half of the weight/bias.
    skip2 = skip_ref[...].reshape(M, C)
    kv = jnp.dot(skip2, kvw_ref[...], preferred_element_type=jnp.float32)
    kv = (kv + kvb_ref[...]).astype(cdt)                      # (M, 2C)

    q = q_ref[...]                                            # (WB, N, C) bf16
    bias = bias_ref[...]                                      # (H, N, N) f32
    mask = mask_ref[...] if has_mask else None                # f32

    # Per-head attention, batched over the WB windows.  Head outputs stay in
    # registers and are lane-concatenated once (no VMEM scratch round-trip,
    # no D-wide masked stores).
    heads = []
    for h in range(H):                                        # static unroll (H small)
        qh = q[:, :, h * D:(h + 1) * D]                       # (WB, N, D)
        kh = kv[:, h * D:(h + 1) * D].reshape(WB, N, D)       # (WB, N, D)
        vh = kv[:, C + h * D:C + (h + 1) * D].reshape(WB, N, D)

        s = jnp.einsum("wnd,wmd->wnm", qh, kh,
                       preferred_element_type=jnp.float32)    # (WB, N, N) f32
        s = s + bias[h][None]
        if has_mask:
            if mask_repeat:
                nWm = mask.shape[0]
                s = (s.reshape(WB // nWm, nWm, N, N) + mask[None]).reshape(WB, N, N)
            else:
                s = s + mask
        s = s - jnp.max(s, axis=-1, keepdims=True)
        e = jnp.exp(s.astype(exp_dtype))                      # bf16 on v6e/v7x
        rs = jnp.sum(e.astype(jnp.float32), axis=-1, keepdims=True)
        # Deferred softmax normalization: rescale after the PV matmul so the
        # broadcast multiply is (WB,N,D) instead of (WB,N,N).
        oh = jnp.einsum("wnm,wmd->wnd", e.astype(cdt), vh,
                        preferred_element_type=jnp.float32)   # (WB, N, D) f32
        heads.append(oh * pl.reciprocal(rs, approx=True))

    # TODO(synk): attn_drop / proj_drop are identity at inference (p = 0.0).
    x = jnp.concatenate(heads, axis=-1)                       # (WB, N, C) f32
    if has_pos:
        x = x + pos_ref[...].astype(jnp.float32)
    out = jnp.dot(x.reshape(M, C).astype(cdt), projw_ref[...],
                  preferred_element_type=jnp.float32) + projb_ref[...]
    o_ref[...] = out.reshape(WB, N, C).astype(o_ref.dtype)


def window_attention_kv(skip, x_up, params, window_size, num_heads,
                        pos_embed=None, mask=None, qk_scale=None):
    B_, N, C = skip.shape
    H = num_heads
    assert C % H == 0
    D = C // H
    scale = float(qk_scale) if qk_scale is not None else float(D) ** (-0.5)
    out_dtype = skip.dtype
    cdt = jnp.bfloat16

    cfg = _tpu_config()
    has_pos = pos_embed is not None
    has_mask = mask is not None
    nW = int(mask.shape[0]) if has_mask else None

    WB = _choose_window_batch(B_, N, C, H, nW, cfg["vmem_budget"],
                              cfg["prefer_even_grid"], has_pos=has_pos)
    grid = (B_ // WB,)

    # Relative position bias gather (cheap JAX glue, grid-invariant, f32).
    rel_idx = _relative_position_index(window_size)                   # (N, N) numpy
    table = params["rel_pos_bias_table"]                              # (L, H)
    rel_bias = table[rel_idx.reshape(-1)].reshape(N, N, H)
    rel_bias = jnp.transpose(rel_bias, (2, 0, 1)).astype(jnp.float32)  # (H, N, N)

    # Fold the qk scale into the k-half of the kv projection (done once on a
    # tiny weight; constant-folded under jit).
    scale_vec = jnp.concatenate([jnp.full((C,), scale, jnp.float32),
                                 jnp.ones((C,), jnp.float32)])
    kv_w = (params["kv_w"].astype(jnp.float32) * scale_vec[None, :]).astype(cdt)
    kv_b = (params["kv_b"].astype(jnp.float32) * scale_vec).reshape(1, 2 * C)
    proj_w = params["proj_w"].astype(cdt)                             # (C, C)
    proj_b = params["proj_b"].reshape(1, C).astype(jnp.float32)

    in_specs = [
        pl.BlockSpec((WB, N, C), lambda g: (g, 0, 0)),                # skip
        pl.BlockSpec((WB, N, C), lambda g: (g, 0, 0)),                # x_up (q)
        pl.BlockSpec((C, 2 * C), lambda g: (0, 0)),                   # kv weight (scaled)
        pl.BlockSpec((1, 2 * C), lambda g: (0, 0)),                   # kv bias (scaled)
        pl.BlockSpec((C, C), lambda g: (0, 0)),                       # proj weight
        pl.BlockSpec((1, C), lambda g: (0, 0)),                       # proj bias
        pl.BlockSpec((H, N, N), lambda g: (0, 0, 0)),                 # rel-pos bias (f32)
    ]
    args = [skip.astype(cdt), x_up.astype(cdt), kv_w, kv_b, proj_w, proj_b,
            rel_bias]

    if has_pos:
        in_specs.append(pl.BlockSpec((WB, N, C), lambda g: (g, 0, 0)))
        args.append(pos_embed.astype(cdt))

    mask_repeat = False
    mask_bytes = 0
    if has_mask:
        mask_f = jnp.asarray(mask, dtype=jnp.float32)
        if WB % nW == 0:
            # Stream the original (nW, N, N) mask grid-invariantly; the kernel
            # broadcasts it with a layout-free leading-dim split of the scores.
            mask_repeat = True
            in_specs.append(pl.BlockSpec((nW, N, N), lambda g: (0, 0, 0)))
        else:
            # nW % WB == 0: block g needs the contiguous mask slab at block
            # index g % (nW // WB).
            nblk = nW // WB
            in_specs.append(pl.BlockSpec((WB, N, N),
                                         lambda g, _n=nblk: (g % _n, 0, 0)))
        args.append(mask_f)
        mask_bytes = int(np.prod(mask_f.shape)) * 4

    kernel = functools.partial(
        _window_attn_kv_kernel, num_heads=H, has_pos=has_pos,
        has_mask=has_mask, mask_repeat=mask_repeat,
        exp_dtype=jnp.bfloat16 if cfg["use_bf16_exp"] else jnp.float32)

    cost = pl.CostEstimate(
        flops=(2 * B_ * N * C * (2 * C)          # kv projection
               + 4 * B_ * H * N * N * D          # qk^T and attn@v
               + 2 * B_ * N * C * C),            # output projection
        transcendentals=B_ * H * N * N,          # exp in softmax
        bytes_accessed=(2 * B_ * N * C * 2       # skip / x_up (bf16)
                        + (B_ * N * C * 2 if has_pos else 0)
                        + B_ * N * C * int(np.dtype(out_dtype).itemsize)
                        + (2 * C * C + C * C) * 2 + 3 * C * 4
                        + H * N * N * 4 + mask_bytes),
    )

    return pl.pallas_call(
        kernel,
        out_shape=jax.ShapeDtypeStruct((B_, N, C), out_dtype),
        grid=grid,
        in_specs=in_specs,
        out_specs=pl.BlockSpec((WB, N, C), lambda g: (g, 0, 0)),
        compiler_params=pltpu.CompilerParams(
            dimension_semantics=("parallel",),
            vmem_limit_bytes=int(cfg["vmem_limit"])),
        cost_estimate=cost,
    )(*args)


def _reference(skip, x_up, params, window_size, num_heads,
               pos_embed=None, mask=None, qk_scale=None):
    """Pure-JAX f32 replica of the PyTorch forward for verification."""
    B_, N, C = skip.shape
    D = C // num_heads
    scale = qk_scale if qk_scale is not None else D ** (-0.5)
    kv = skip @ params["kv_w"] + params["kv_b"]
    kv = kv.reshape(B_, N, 2, num_heads, D).transpose(2, 0, 3, 1, 4)
    q = x_up.reshape(B_, N, num_heads, D).transpose(0, 2, 1, 3)
    k, v = kv[0], kv[1]
    q = q * scale
    attn = jnp.einsum("bhnd,bhmd->bhnm", q, k)
    rel_idx = _relative_position_index(window_size)
    rel_bias = params["rel_pos_bias_table"][rel_idx.reshape(-1)]
    rel_bias = rel_bias.reshape(N, N, num_heads).transpose(2, 0, 1)
    attn = attn + rel_bias[None]
    if mask is not None:
        nW = mask.shape[0]
        attn = attn.reshape(B_ // nW, nW, num_heads, N, N) + mask[None, :, None]
        attn = attn.reshape(-1, num_heads, N, N)
    attn = jax.nn.softmax(attn, axis=-1)
    x = jnp.einsum("bhnm,bhmd->bhnd", attn, v).transpose(0, 2, 1, 3).reshape(B_, N, C)
    if pos_embed is not None:
        x = x + pos_embed
    return x @ params["proj_w"] + params["proj_b"]


if __name__ == "__main__":
    key = jax.random.PRNGKey(0)
    window_size = (2, 2, 2)
    num_heads = 4
    dim = 32
    nW = 4                       # number of distinct windows (for the mask case)
    batch = 2
    B_ = batch * nW              # 8 windows total
    N = window_size[0] * window_size[1] * window_size[2]
    L = ((2 * window_size[0] - 1) * (2 * window_size[1] - 1)
         * (2 * window_size[2] - 1))

    ks = jax.random.split(key, 9)
    params = {
        "rel_pos_bias_table": 0.02 * jax.random.normal(ks[0], (L, num_heads), jnp.float32),
        "kv_w": 0.05 * jax.random.normal(ks[1], (dim, 2 * dim), jnp.float32),
        "kv_b": 0.01 * jax.random.normal(ks[2], (2 * dim,), jnp.float32),
        "proj_w": 0.05 * jax.random.normal(ks[3], (dim, dim), jnp.float32),
        "proj_b": 0.01 * jax.random.normal(ks[4], (dim,), jnp.float32),
    }
    skip = jax.random.normal(ks[5], (B_, N, dim), jnp.float32)
    x_up = jax.random.normal(ks[6], (B_, N, dim), jnp.float32)
    pos_embed = 0.1 * jax.random.normal(ks[7], (B_, N, dim), jnp.float32)
    mask_bits = jax.random.bernoulli(ks[8], 0.5, (nW, N, N))
    mask = jnp.where(mask_bits, 0.0, -100.0).astype(jnp.float32)

    # --- no-mask path (mask add compiled out) -------------------------------
    out = window_attention_kv(skip, x_up, params, window_size, num_heads,
                              pos_embed=pos_embed)
    jax.block_until_ready(out)
    ref = _reference(skip, x_up, params, window_size, num_heads,
                     pos_embed=pos_embed)
    np.testing.assert_allclose(np.asarray(out), np.asarray(ref),
                               rtol=5e-2, atol=1e-2)

    # --- masked path (original (nW, N, N) mask, never broadcast to B_) ------
    out_m = window_attention_kv(skip, x_up, params, window_size, num_heads,
                                pos_embed=pos_embed, mask=mask)
    jax.block_until_ready(out_m)
    ref_m = _reference(skip, x_up, params, window_size, num_heads,
                       pos_embed=pos_embed, mask=mask)
    np.testing.assert_allclose(np.asarray(out_m), np.asarray(ref_m),
                               rtol=5e-2, atol=1e-2)

    print("KERNEL_OK")
</pallas_src>

<mosaic_0001>
module attributes {stable_mosaic.version = 11 : i64} {
  func.func @_window_attn_kv_kernel(%arg0: i32, %arg1: memref<8x8x32xbf16, #tpu.memory_space<vmem>>, %arg2: memref<8x8x32xbf16, #tpu.memory_space<vmem>>, %arg3: memref<32x64xbf16, #tpu.memory_space<vmem>>, %arg4: memref<1x64xf32, #tpu.memory_space<vmem>>, %arg5: memref<32x32xbf16, #tpu.memory_space<vmem>>, %arg6: memref<1x32xf32, #tpu.memory_space<vmem>>, %arg7: memref<4x8x8xf32, #tpu.memory_space<vmem>>, %arg8: memref<8x8x32xbf16, #tpu.memory_space<vmem>>, %arg9: memref<8x8x32xf32, #tpu.memory_space<vmem>>) attributes {dimension_semantics = [#tpu.dimension_semantics<parallel>], iteration_bounds = array<i64: 1>, scalar_prefetch = 0 : i64, scratch_operands = 0 : i64, tpu.core_type = #tpu.core_type<tc>, window_params = [{transform_indices = @transform_0, window_bounds = array<i64: 8, 8, 32>}, {transform_indices = @transform_1, window_bounds = array<i64: 8, 8, 32>}, {pipeline_mode = #tpu.pipeline_mode<synchronous>, transform_indices = @transform_2, window_bounds = array<i64: 32, 64>}, {pipeline_mode = #tpu.pipeline_mode<synchronous>, transform_indices = @transform_3, window_bounds = array<i64: 1, 64>}, {pipeline_mode = #tpu.pipeline_mode<synchronous>, transform_indices = @transform_4, window_bounds = array<i64: 32, 32>}, {pipeline_mode = #tpu.pipeline_mode<synchronous>, transform_indices = @transform_5, window_bounds = array<i64: 1, 32>}, {pipeline_mode = #tpu.pipeline_mode<synchronous>, transform_indices = @transform_6, window_bounds = array<i64: 4, 8, 8>}, {transform_indices = @transform_7, window_bounds = array<i64: 8, 8, 32>}, {transform_indices = @transform_8, window_bounds = array<i64: 8, 8, 32>}]} {
    %c0 = arith.constant 0 : index
    %c0_0 = arith.constant 0 : index
    %c0_1 = arith.constant 0 : index
    %0 = vector.load %arg1[%c0, %c0_0, %c0_1] : memref<8x8x32xbf16, #tpu.memory_space<vmem>>, vector<8x8x32xbf16>
    %1 = vector.shape_cast %0 : vector<8x8x32xbf16> to vector<64x32xbf16>
    %c0_2 = arith.constant 0 : index
    %c0_3 = arith.constant 0 : index
    %2 = vector.load %arg3[%c0_2, %c0_3] : memref<32x64xbf16, #tpu.memory_space<vmem>>, vector<32x64xbf16>
    %cst = arith.constant dense<0.000000e+00> : vector<64x64xf32>
    %3 = tpu.matmul %1, %2, %cst {dimension_numbers = #tpu.dot_dimension_numbers<[1], [0], [0], [1], [0, 0, 1, 1], [], []>} : vector<64x32xbf16>, vector<32x64xbf16>, vector<64x64xf32> -> vector<64x64xf32>
    %c0_4 = arith.constant 0 : index
    %c0_5 = arith.constant 0 : index
    %4 = vector.load %arg4[%c0_4, %c0_5] : memref<1x64xf32, #tpu.memory_space<vmem>>, vector<1x64xf32>
    %5 = vector.broadcast %4 : vector<1x64xf32> to vector<64x64xf32>
    %6 = arith.addf %3, %5 : vector<64x64xf32>
    %7 = arith.truncf %6 : vector<64x64xf32> to vector<64x64xbf16>
    %c0_6 = arith.constant 0 : index
    %c0_7 = arith.constant 0 : index
    %c0_8 = arith.constant 0 : index
    %8 = vector.load %arg2[%c0_6, %c0_7, %c0_8] : memref<8x8x32xbf16, #tpu.memory_space<vmem>>, vector<8x8x32xbf16>
    %c0_9 = arith.constant 0 : index
    %c0_10 = arith.constant 0 : index
    %c0_11 = arith.constant 0 : index
    %9 = vector.load %arg7[%c0_9, %c0_10, %c0_11] : memref<4x8x8xf32, #tpu.memory_space<vmem>>, vector<4x8x8xf32>
    %10 = vector.extract_strided_slice %8 {offsets = [0, 0, 0], sizes = [8, 8, 8], strides = [1, 1, 1]} : vector<8x8x32xbf16> to vector<8x8x8xbf16>
    %11 = vector.extract_strided_slice %7 {offsets = [0, 0], sizes = [64, 8], strides = [1, 1]} : vector<64x64xbf16> to vector<64x8xbf16>
    %12 = vector.shape_cast %11 : vector<64x8xbf16> to vector<8x8x8xbf16>
    %13 = vector.extract_strided_slice %7 {offsets = [0, 32], sizes = [64, 8], strides = [1, 1]} : vector<64x64xbf16> to vector<64x8xbf16>
    %14 = vector.shape_cast %13 : vector<64x8xbf16> to vector<8x8x8xbf16>
    "tpu.trace_start"() <{level = 10 : i32, message = "wnd,wmd->wnm"}> : () -> ()
    %cst_12 = arith.constant dense<0.000000e+00> : vector<8x8x8xf32>
    %15 = tpu.matmul %10, %12, %cst_12 {dimension_numbers = #tpu.dot_dimension_numbers<[2], [2], [1], [1], [0, 0, 0, 1, 1, 1], [0], [0]>} : vector<8x8x8xbf16>, vector<8x8x8xbf16>, vector<8x8x8xf32> -> vector<8x8x8xf32>
    "tpu.trace_stop"() : () -> ()
    %16 = vector.extract_strided_slice %9 {offsets = [0, 0, 0], sizes = [1, 8, 8], strides = [1, 1, 1]} : vector<4x8x8xf32> to vector<1x8x8xf32>
    %17 = vector.shape_cast %16 : vector<1x8x8xf32> to vector<8x8xf32>
    %18 = vector.shape_cast %17 : vector<8x8xf32> to vector<1x8x8xf32>
    %19 = vector.broadcast %18 : vector<1x8x8xf32> to vector<8x8x8xf32>
    %20 = arith.addf %15, %19 : vector<8x8x8xf32>
    %cst_13 = arith.constant dense<0xFF800000> : vector<8x8xf32>
    %21 = vector.multi_reduction <maximumf>, %20, %cst_13 [2] : vector<8x8x8xf32> to vector<8x8xf32>
    %22 = vector.shape_cast %21 : vector<8x8xf32> to vector<8x8x1xf32>
    %23 = vector.broadcast %22 : vector<8x8x1xf32> to vector<8x8x8xf32>
    %24 = arith.subf %20, %23 : vector<8x8x8xf32>
    %25 = math.exp %24 : vector<8x8x8xf32>
    %cst_14 = arith.constant dense<0.000000e+00> : vector<8x8xf32>
    %26 = vector.multi_reduction <add>, %25, %cst_14 [2] : vector<8x8x8xf32> to vector<8x8xf32>
    %27 = vector.shape_cast %26 : vector<8x8xf32> to vector<8x8x1xf32>
    %28 = arith.truncf %25 : vector<8x8x8xf32> to vector<8x8x8xbf16>
    "tpu.trace_start"() <{level = 10 : i32, message = "wnm,wmd->wnd"}> : () -> ()
    %cst_15 = arith.constant dense<0.000000e+00> : vector<8x8x8xf32>
    %29 = tpu.matmul %28, %14, %cst_15 {dimension_numbers = #tpu.dot_dimension_numbers<[2], [1], [1], [2], [0, 0, 0, 1, 1, 2], [0], [0]>} : vector<8x8x8xbf16>, vector<8x8x8xbf16>, vector<8x8x8xf32> -> vector<8x8x8xf32>
    "tpu.trace_stop"() : () -> ()
    %30 = tpu.reciprocal %27 {approx = true} : vector<8x8x1xf32> -> vector<8x8x1xf32>
    %31 = vector.broadcast %30 : vector<8x8x1xf32> to vector<8x8x8xf32>
    %32 = arith.mulf %29, %31 : vector<8x8x8xf32>
    %33 = vector.extract_strided_slice %8 {offsets = [0, 0, 8], sizes = [8, 8, 8], strides = [1, 1, 1]} : vector<8x8x32xbf16> to vector<8x8x8xbf16>
    %34 = vector.extract_strided_slice %7 {offsets = [0, 8], sizes = [64, 8], strides = [1, 1]} : vector<64x64xbf16> to vector<64x8xbf16>
    %35 = vector.shape_cast %34 : vector<64x8xbf16> to vector<8x8x8xbf16>
    %36 = vector.extract_strided_slice %7 {offsets = [0, 40], sizes = [64, 8], strides = [1, 1]} : vector<64x64xbf16> to vector<64x8xbf16>
    %37 = vector.shape_cast %36 : vector<64x8xbf16> to vector<8x8x8xbf16>
    "tpu.trace_start"() <{level = 10 : i32, message = "wnd,wmd->wnm"}> : () -> ()
    %cst_16 = arith.constant dense<0.000000e+00> : vector<8x8x8xf32>
    %38 = tpu.matmul %33, %35, %cst_16 {dimension_numbers = #tpu.dot_dimension_numbers<[2], [2], [1], [1], [0, 0, 0, 1, 1, 1], [0], [0]>} : vector<8x8x8xbf16>, vector<8x8x8xbf16>, vector<8x8x8xf32> -> vector<8x8x8xf32>
    "tpu.trace_stop"() : () -> ()
    %39 = vector.extract_strided_slice %9 {offsets = [1, 0, 0], sizes = [1, 8, 8], strides = [1, 1, 1]} : vector<4x8x8xf32> to vector<1x8x8xf32>
    %40 = vector.shape_cast %39 : vector<1x8x8xf32> to vector<8x8xf32>
    %41 = vector.shape_cast %40 : vector<8x8xf32> to vector<1x8x8xf32>
    %42 = vector.broadcast %41 : vector<1x8x8xf32> to vector<8x8x8xf32>
    %43 = arith.addf %38, %42 : vector<8x8x8xf32>
    %cst_17 = arith.constant dense<0xFF800000> : vector<8x8xf32>
    %44 = vector.multi_reduction <maximumf>, %43, %cst_17 [2] : vector<8x8x8xf32> to vector<8x8xf32>
    %45 = vector.shape_cast %44 : vector<8x8xf32> to vector<8x8x1xf32>
    %46 = vector.broadcast %45 : vector<8x8x1xf32> to vector<8x8x8xf32>
    %47 = arith.subf %43, %46 : vector<8x8x8xf32>
    %48 = math.exp %47 : vector<8x8x8xf32>
    %cst_18 = arith.constant dense<0.000000e+00> : vector<8x8xf32>
    %49 = vector.multi_reduction <add>, %48, %cst_18 [2] : vector<8x8x8xf32> to vector<8x8xf32>
    %50 = vector.shape_cast %49 : vector<8x8xf32> to vector<8x8x1xf32>
    %51 = arith.truncf %48 : vector<8x8x8xf32> to vector<8x8x8xbf16>
    "tpu.trace_start"() <{level = 10 : i32, message = "wnm,wmd->wnd"}> : () -> ()
    %cst_19 = arith.constant dense<0.000000e+00> : vector<8x8x8xf32>
    %52 = tpu.matmul %51, %37, %cst_19 {dimension_numbers = #tpu.dot_dimension_numbers<[2], [1], [1], [2], [0, 0, 0, 1, 1, 2], [0], [0]>} : vector<8x8x8xbf16>, vector<8x8x8xbf16>, vector<8x8x8xf32> -> vector<8x8x8xf32>
    "tpu.trace_stop"() : () -> ()
    %53 = tpu.reciprocal %50 {approx = true} : vector<8x8x1xf32> -> vector<8x8x1xf32>
    %54 = vector.broadcast %53 : vector<8x8x1xf32> to vector<8x8x8xf32>
    %55 = arith.mulf %52, %54 : vector<8x8x8xf32>
    %56 = vector.extract_strided_slice %8 {offsets = [0, 0, 16], sizes = [8, 8, 8], strides = [1, 1, 1]} : vector<8x8x32xbf16> to vector<8x8x8xbf16>
    %57 = vector.extract_strided_slice %7 {offsets = [0, 16], sizes = [64, 8], strides = [1, 1]} : vector<64x64xbf16> to vector<64x8xbf16>
    %58 = vector.shape_cast %57 : vector<64x8xbf16> to vector<8x8x8xbf16>
    %59 = vector.extract_strided_slice %7 {offsets = [0, 48], sizes = [64, 8], strides = [1, 1]} : vector<64x64xbf16> to vector<64x8xbf16>
    %60 = vector.shape_cast %59 : vector<64x8xbf16> to vector<8x8x8xbf16>
    "tpu.trace_start"() <{level = 10 : i32, message = "wnd,wmd->wnm"}> : () -> ()
    %cst_20 = arith.constant dense<0.000000e+00> : vector<8x8x8xf32>
    %61 = tpu.matmul %56, %58, %cst_20 {dimension_numbers = #tpu.dot_dimension_numbers<[2], [2], [1], [1], [0, 0, 0, 1, 1, 1], [0], [0]>} : vector<8x8x8xbf16>, vector<8x8x8xbf16>, vector<8x8x8xf32> -> vector<8x8x8xf32>
    "tpu.trace_stop"() : () -> ()
    %62 = vector.extract_strided_slice %9 {offsets = [2, 0, 0], sizes = [1, 8, 8], strides = [1, 1, 1]} : vector<4x8x8xf32> to vector<1x8x8xf32>
    %63 = vector.shape_cast %62 : vector<1x8x8xf32> to vector<8x8xf32>
    %64 = vector.shape_cast %63 : vector<8x8xf32> to vector<1x8x8xf32>
    %65 = vector.broadcast %64 : vector<1x8x8xf32> to vector<8x8x8xf32>
    %66 = arith.addf %61, %65 : vector<8x8x8xf32>
    %cst_21 = arith.constant dense<0xFF800000> : vector<8x8xf32>
    %67 = vector.multi_reduction <maximumf>, %66, %cst_21 [2] : vector<8x8x8xf32> to vector<8x8xf32>
    %68 = vector.shape_cast %67 : vector<8x8xf32> to vector<8x8x1xf32>
    %69 = vector.broadcast %68 : vector<8x8x1xf32> to vector<8x8x8xf32>
    %70 = arith.subf %66, %69 : vector<8x8x8xf32>
    %71 = math.exp %70 : vector<8x8x8xf32>
    %cst_22 = arith.constant dense<0.000000e+00> : vector<8x8xf32>
    %72 = vector.multi_reduction <add>, %71, %cst_22 [2] : vector<8x8x8xf32> to vector<8x8xf32>
    %73 = vector.shape_cast %72 : vector<8x8xf32> to vector<8x8x1xf32>
    %74 = arith.truncf %71 : vector<8x8x8xf32> to vector<8x8x8xbf16>
    "tpu.trace_start"() <{level = 10 : i32, message = "wnm,wmd->wnd"}> : () -> ()
    %cst_23 = arith.constant dense<0.000000e+00> : vector<8x8x8xf32>
    %75 = tpu.matmul %74, %60, %cst_23 {dimension_numbers = #tpu.dot_dimension_numbers<[2], [1], [1], [2], [0, 0, 0, 1, 1, 2], [0], [0]>} : vector<8x8x8xbf16>, vector<8x8x8xbf16>, vector<8x8x8xf32> -> vector<8x8x8xf32>
    "tpu.trace_stop"() : () -> ()
    %76 = tpu.reciprocal %73 {approx = true} : vector<8x8x1xf32> -> vector<8x8x1xf32>
    %77 = vector.broadcast %76 : vector<8x8x1xf32> to vector<8x8x8xf32>
    %78 = arith.mulf %75, %77 : vector<8x8x8xf32>
    %79 = vector.extract_strided_slice %8 {offsets = [0, 0, 24], sizes = [8, 8, 8], strides = [1, 1, 1]} : vector<8x8x32xbf16> to vector<8x8x8xbf16>
    %80 = vector.extract_strided_slice %7 {offsets = [0, 24], sizes = [64, 8], strides = [1, 1]} : vector<64x64xbf16> to vector<64x8xbf16>
    %81 = vector.shape_cast %80 : vector<64x8xbf16> to vector<8x8x8xbf16>
    %82 = vector.extract_strided_slice %7 {offsets = [0, 56], sizes = [64, 8], strides = [1, 1]} : vector<64x64xbf16> to vector<64x8xbf16>
    %83 = vector.shape_cast %82 : vector<64x8xbf16> to vector<8x8x8xbf16>
    "tpu.trace_start"() <{level = 10 : i32, message = "wnd,wmd->wnm"}> : () -> ()
    %cst_24 = arith.constant dense<0.000000e+00> : vector<8x8x8xf32>
    %84 = tpu.matmul %79, %81, %cst_24 {dimension_numbers = #tpu.dot_dimension_numbers<[2], [2], [1], [1], [0, 0, 0, 1, 1, 1], [0], [0]>} : vector<8x8x8xbf16>, vector<8x8x8xbf16>, vector<8x8x8xf32> -> vector<8x8x8xf32>
    "tpu.trace_stop"() : () -> ()
    %85 = vector.extract_strided_slice %9 {offsets = [3, 0, 0], sizes = [1, 8, 8], strides = [1, 1, 1]} : vector<4x8x8xf32> to vector<1x8x8xf32>
    %86 = vector.shape_cast %85 : vector<1x8x8xf32> to vector<8x8xf32>
    %87 = vector.shape_cast %86 : vector<8x8xf32> to vector<1x8x8xf32>
    %88 = vector.broadcast %87 : vector<1x8x8xf32> to vector<8x8x8xf32>
    %89 = arith.addf %84, %88 : vector<8x8x8xf32>
    %cst_25 = arith.constant dense<0xFF800000> : vector<8x8xf32>
    %90 = vector.multi_reduction <maximumf>, %89, %cst_25 [2] : vector<8x8x8xf32> to vector<8x8xf32>
    %91 = vector.shape_cast %90 : vector<8x8xf32> to vector<8x8x1xf32>
    %92 = vector.broadcast %91 : vector<8x8x1xf32> to vector<8x8x8xf32>
    %93 = arith.subf %89, %92 : vector<8x8x8xf32>
    %94 = math.exp %93 : vector<8x8x8xf32>
    %cst_26 = arith.constant dense<0.000000e+00> : vector<8x8xf32>
    %95 = vector.multi_reduction <add>, %94, %cst_26 [2] : vector<8x8x8xf32> to vector<8x8xf32>
    %96 = vector.shape_cast %95 : vector<8x8xf32> to vector<8x8x1xf32>
    %97 = arith.truncf %94 : vector<8x8x8xf32> to vector<8x8x8xbf16>
    "tpu.trace_start"() <{level = 10 : i32, message = "wnm,wmd->wnd"}> : () -> ()
    %cst_27 = arith.constant dense<0.000000e+00> : vector<8x8x8xf32>
    %98 = tpu.matmul %97, %83, %cst_27 {dimension_numbers = #tpu.dot_dimension_numbers<[2], [1], [1], [2], [0, 0, 0, 1, 1, 2], [0], [0]>} : vector<8x8x8xbf16>, vector<8x8x8xbf16>, vector<8x8x8xf32> -> vector<8x8x8xf32>
    "tpu.trace_stop"() : () -> ()
    %99 = tpu.reciprocal %96 {approx = true} : vector<8x8x1xf32> -> vector<8x8x1xf32>
    %100 = vector.broadcast %99 : vector<8x8x1xf32> to vector<8x8x8xf32>
    %101 = arith.mulf %98, %100 : vector<8x8x8xf32>
    %102 = tpu.concatenate %32, %55, %78, %101 in 2 : vector<8x8x8xf32>, vector<8x8x8xf32>, vector<8x8x8xf32>, vector<8x8x8xf32> -> vector<8x8x32xf32>
    %c0_28 = arith.constant 0 : index
    %c0_29 = arith.constant 0 : index
    %c0_30 = arith.constant 0 : index
    %103 = vector.load %arg8[%c0_28, %c0_29, %c0_30] : memref<8x8x32xbf16, #tpu.memory_space<vmem>>, vector<8x8x32xbf16>
    %104 = arith.extf %103 : vector<8x8x32xbf16> to vector<8x8x32xf32>
    %105 = arith.addf %102, %104 : vector<8x8x32xf32>
    %106 = vector.shape_cast %105 : vector<8x8x32xf32> to vector<64x32xf32>
    %107 = arith.truncf %106 : vector<64x32xf32> to vector<64x32xbf16>
    %c0_31 = arith.constant 0 : index
    %c0_32 = arith.constant 0 : index
    %108 = vector.load %arg5[%c0_31, %c0_32] : memref<32x32xbf16, #tpu.memory_space<vmem>>, vector<32x32xbf16>
    %cst_33 = arith.constant dense<0.000000e+00> : vector<64x32xf32>
    %109 = tpu.matmul %107, %108, %cst_33 {dimension_numbers = #tpu.dot_dimension_numbers<[1], [0], [0], [1], [0, 0, 1, 1], [], []>} : vector<64x32xbf16>, vector<32x32xbf16>, vector<64x32xf32> -> vector<64x32xf32>
    %c0_34 = arith.constant 0 : index
    %c0_35 = arith.constant 0 : index
    %110 = vector.load %arg6[%c0_34, %c0_35] : memref<1x32xf32, #tpu.memory_space<vmem>>, vector<1x32xf32>
    %111 = vector.broadcast %110 : vector<1x32xf32> to vector<64x32xf32>
    %112 = arith.addf %109, %111 : vector<64x32xf32>
    %113 = vector.shape_cast %112 : vector<64x32xf32> to vector<8x8x32xf32>
    %c0_36 = arith.constant 0 : index
    %c0_37 = arith.constant 0 : index
    %c0_38 = arith.constant 0 : index
    %114 = vector.load %arg9[%c0_36, %c0_37, %c0_38] : memref<8x8x32xf32, #tpu.memory_space<vmem>>, vector<8x8x32xf32>
    tpu.vector_store %arg9[%c0_36, %c0_37, %c0_38], %113 {strides = array<i32>} : memref<8x8x32xf32, #tpu.memory_space<vmem>>, vector<8x8x32xf32>,
    return
  }
  func.func @transform_0(%arg0: i32) -> (i32, i32, i32) {
    %c0_i32 = arith.constant 0 : i32
    %c0_i32_0 = arith.constant 0 : i32
    %c0_i32_1 = arith.constant 0 : i32
    return %arg0, %c0_i32, %c0_i32_0 : i32, i32, i32
  }
  func.func @transform_1(%arg0: i32) -> (i32, i32, i32) {
    %c0_i32 = arith.constant 0 : i32
    %c0_i32_0 = arith.constant 0 : i32
    %c0_i32_1 = arith.constant 0 : i32
    return %arg0, %c0_i32, %c0_i32_0 : i32, i32, i32
  }
  func.func @transform_2(%arg0: i32) -> (i32, i32) {
    %c0_i32 = arith.constant 0 : i32
    %c0_i32_0 = arith.constant 0 : i32
    %c0_i32_1 = arith.constant 0 : i32
    return %c0_i32, %c0_i32_0 : i32, i32
  }
  func.func @transform_3(%arg0: i32) -> (i32, i32) {
    %c0_i32 = arith.constant 0 : i32
    %c0_i32_0 = arith.constant 0 : i32
    %c0_i32_1 = arith.constant 0 : i32
    return %c0_i32, %c0_i32_0 : i32, i32
  }
  func.func @transform_4(%arg0: i32) -> (i32, i32) {
    %c0_i32 = arith.constant 0 : i32
    %c0_i32_0 = arith.constant 0 : i32
    %c0_i32_1 = arith.constant 0 : i32
    return %c0_i32, %c0_i32_0 : i32, i32
  }
  func.func @transform_5(%arg0: i32) -> (i32, i32) {
    %c0_i32 = arith.constant 0 : i32
    %c0_i32_0 = arith.constant 0 : i32
    %c0_i32_1 = arith.constant 0 : i32
    return %c0_i32, %c0_i32_0 : i32, i32
  }
  func.func @transform_6(%arg0: i32) -> (i32, i32, i32) {
    %c0_i32 = arith.constant 0 : i32
    %c0_i32_0 = arith.constant 0 : i32
    %c0_i32_1 = arith.constant 0 : i32
    %c0_i32_2 = arith.constant 0 : i32
    return %c0_i32, %c0_i32_0, %c0_i32_1 : i32, i32, i32
  }
  func.func @transform_7(%arg0: i32) -> (i32, i32, i32) {
    %c0_i32 = arith.constant 0 : i32
    %c0_i32_0 = arith.constant 0 : i32
    %c0_i32_1 = arith.constant 0 : i32
    return %arg0, %c0_i32, %c0_i32_0 : i32, i32, i32
  }
  func.func @transform_8(%arg0: i32) -> (i32, i32, i32) {
    %c0_i32 = arith.constant 0 : i32
    %c0_i32_0 = arith.constant 0 : i32
    %c0_i32_1 = arith.constant 0 : i32
    return %arg0, %c0_i32, %c0_i32_0 : i32, i32, i32
  }
}

</mosaic_0001>

<llo_original>
// kernel: tpu_custom_call.1
$region0: #{tpu_custom_call.1}
  #allocation0 [shape = 'u32[]', space=smem, size = 0x4, offset = 0x4, fixed_abs, tag = 'smem constant byte address 0x4 - core index']
  #allocation1 [shape = 'u32[72,128]{1,0:T(1,128)}', space=vmem, size = 0x9000, scoped, tag = 'internal scratch']
  %s0 = inlined_call_operand.hbm [shape: bf16[8,8,32], index: 0, kind: input, shape index: {}]
  %s1 = inlined_call_operand.hbm [shape: bf16[8,8,32], index: 1, kind: input, shape index: {}]
  %s2 = inlined_call_operand.hbm [shape: bf16[32,64], index: 2, kind: input, shape index: {}]
  %s3 = inlined_call_operand.vmem [shape: f32[1,64], index: 3, kind: input, shape index: {}]
  %s4 = inlined_call_operand.hbm [shape: bf16[32,32], index: 4, kind: input, shape index: {}]
  %s5 = inlined_call_operand.vmem [shape: f32[1,32], index: 5, kind: input, shape index: {}]
  %s6 = inlined_call_operand.hbm [shape: f32[4,8,8], index: 6, kind: input, shape index: {}]
  %s7 = inlined_call_operand.hbm [shape: bf16[8,8,32], index: 7, kind: input, shape index: {}]
  %s8 = inlined_call_operand.hbm [shape: f32[8,8,32], index: 8, kind: output, shape index: {}]
  %s9 = sld [smem:[#allocation0]]
  $region66: #{tpu_custom_call.1} parent=0
    _
  %s11 = ssub.s32 1, %s9
  %s12 = scalar_select 0, %s11, %s9
  $region1: #{tpu_custom_call.1} parent=0
    #allocation2 [shape = 'u8[16384]{0}', space=vmem, size = 0x4000, scoped, tag = 'input window, operand 0, single buffered']
    #allocation3 [shape = 's32[1]{0}', space=sflag, size = 0x4, scoped, tag = 'scoped memory for tpu_custom_call.1']
    #allocation4 [shape = 's32[1]{0}', space=sflag, size = 0x4, scoped, tag = 'scoped memory for tpu_custom_call.1']
    #allocation5 [shape = 'u8[16384]{0}', space=vmem, size = 0x4000, scoped, tag = 'input window, operand 1, single buffered']
    #allocation6 [shape = 's32[1]{0}', space=sflag, size = 0x4, scoped, tag = 'scoped memory for tpu_custom_call.1']
    #allocation7 [shape = 'u8[8192]{0}', space=vmem, size = 0x2000, scoped, tag = 'input window, operand 2, single buffered']
    #allocation8 [shape = 'u8[8192]{0}', space=vmem, size = 0x2000, scoped, tag = 'input window, operand 4, single buffered']
    #allocation9 [shape = 's32[1]{0}', space=sflag, size = 0x4, scoped, tag = 'scoped memory for tpu_custom_call.1']
    #allocation10 [shape = 'u8[16384]{0}', space=vmem, size = 0x4000, scoped, tag = 'input window, operand 6, single buffered']
    #allocation11 [shape = 'u8[16384]{0}', space=vmem, size = 0x4000, scoped, tag = 'input window, operand 7, single buffered']
    #allocation12 [shape = 's32[1]{0}', space=sflag, size = 0x4, scoped, tag = 'scoped memory for tpu_custom_call.1']
    #allocation13 [shape = 'u8[32768]{0}', space=vmem, size = 0x8000, scoped, tag = 'output window, operand 0, single buffered']
    %13 = vsyncpa [#allocation3], 0
    %14 = vsyncpa [#allocation6], 0
    %15 = vsyncpa [#allocation9], 0
    %16 = vsyncpa [#allocation12], 0
    %17 = vsyncpa [#allocation4], 0
    // Predicated region
    $region2: #{tpu_custom_call.1} parent=1 // pred_check
      _
    $region3: #{tpu_custom_call.1} parent=1 // pred_check_branch
      %19 = sbr.rel (0) target = $region5
    $region4: #{tpu_custom_call.1} parent=1 // pred_region
      %21 = vsyncadd [#allocation3], 0
      %s22 = sshll.u32 %s0, 4
      %s23 = int_to_ptr.hbm [resolvable:$true] %s22
      %s24 = sshll.u32 [#allocation2], 4
      %s25 = int_to_ptr.vmem [resolvable:$true] %s24
      %30 = dma.hbm_to_vmem [thread:$0]  %s23, 512, %s25, [#allocation3], 64, 64, 4
    $region5: #{tpu_custom_call.1} parent=1 // pred_fallthru
      _
    // Predicated region
    $region6: #{tpu_custom_call.1} parent=1 // pred_check
      _
    $region7: #{tpu_custom_call.1} parent=1 // pred_check_branch
      %32 = sbr.rel (0) target = $region9
    $region8: #{tpu_custom_call.1} parent=1 // pred_region
      %34 = vsyncadd [#allocation6], 0
      %s35 = sshll.u32 %s1, 4
      %s36 = int_to_ptr.hbm [resolvable:$true] %s35
      %s37 = sshll.u32 [#allocation5], 4
      %s38 = int_to_ptr.vmem [resolvable:$true] %s37
      %43 = dma.hbm_to_vmem [thread:$0]  %s36, 512, %s38, [#allocation6], 64, 64, 4
    $region9: #{tpu_custom_call.1} parent=1 // pred_fallthru
      _
    // Predicated region
    $region10: #{tpu_custom_call.1} parent=1 // pred_check
      _
    $region11: #{tpu_custom_call.1} parent=1 // pred_check_branch
      %45 = sbr.rel (0) target = $region13
    $region12: #{tpu_custom_call.1} parent=1 // pred_region
      %47 = vsyncadd [#allocation6], 0
      %s48 = sshll.u32 %s2, 4
      %s49 = int_to_ptr.hbm [resolvable:$true] %s48
      %s50 = sshll.u32 [#allocation7], 4
      %s51 = int_to_ptr.vmem [resolvable:$true] %s50
      %56 = dma.hbm_to_vmem [thread:$0]  %s49, 256, %s51, [#allocation6], 64, 64, 4
    $region13: #{tpu_custom_call.1} parent=1 // pred_fallthru
      _
    // Predicated region
    $region14: #{tpu_custom_call.1} parent=1 // pred_check
      _
    $region15: #{tpu_custom_call.1} parent=1 // pred_check_branch
      %58 = sbr.rel (0) target = $region17
    $region16: #{tpu_custom_call.1} parent=1 // pred_region
      _
    $region17: #{tpu_custom_call.1} parent=1 // pred_fallthru
      _
    // Predicated region
    $region18: #{tpu_custom_call.1} parent=1 // pred_check
      _
    $region19: #{tpu_custom_call.1} parent=1 // pred_check_branch
      %60 = sbr.rel (0) target = $region21
    $region20: #{tpu_custom_call.1} parent=1 // pred_region
      %62 = vsyncadd [#allocation9], 0
      %s63 = sshll.u32 %s4, 4
      %s64 = int_to_ptr.hbm [resolvable:$true] %s63
      %s65 = sshll.u32 [#allocation8], 4
      %s66 = int_to_ptr.vmem [resolvable:$true] %s65
      %71 = dma.hbm_to_vmem [thread:$0]  %s64, 256, %s66, [#allocation9], 64, 64, 4
    $region21: #{tpu_custom_call.1} parent=1 // pred_fallthru
      _
    // Predicated region
    $region22: #{tpu_custom_call.1} parent=1 // pred_check
      _
    $region23: #{tpu_custom_call.1} parent=1 // pred_check_branch
      %73 = sbr.rel (0) target = $region25
    $region24: #{tpu_custom_call.1} parent=1 // pred_region
      _
    $region25: #{tpu_custom_call.1} parent=1 // pred_fallthru
      _
    // Predicated region
    $region26: #{tpu_custom_call.1} parent=1 // pred_check
      _
    $region27: #{tpu_custom_call.1} parent=1 // pred_check_branch
      %75 = sbr.rel (0) target = $region29
    $region28: #{tpu_custom_call.1} parent=1 // pred_region
      %77 = vsyncadd [#allocation9], 0
      %s78 = sshll.u32 %s6, 4
      %s79 = int_to_ptr.hbm [resolvable:$true] %s78
      %s80 = sshll.u32 [#allocation10], 4
      %s81 = int_to_ptr.vmem [resolvable:$true] %s80
      %86 = dma.hbm_to_vmem [thread:$0]  %s79, 512, %s81, [#allocation9], 128, 128, 8
    $region29: #{tpu_custom_call.1} parent=1 // pred_fallthru
      _
    // Predicated region
    $region30: #{tpu_custom_call.1} parent=1 // pred_check
      _
    $region31: #{tpu_custom_call.1} parent=1 // pred_check_branch
      %88 = sbr.rel (0) target = $region33
    $region32: #{tpu_custom_call.1} parent=1 // pred_region
      %90 = vsyncadd [#allocation12], 0
      %s91 = sshll.u32 %s7, 4
      %s92 = int_to_ptr.hbm [resolvable:$true] %s91
      %s93 = sshll.u32 [#allocation11], 4
      %s94 = int_to_ptr.vmem [resolvable:$true] %s93
      %99 = dma.hbm_to_vmem [thread:$0]  %s92, 512, %s94, [#allocation12], 64, 64, 4
    $region33: #{tpu_custom_call.1} parent=1 // pred_fallthru
      _
    // Predicated region
    $region34: #{tpu_custom_call.1} parent=1 // pred_check
      _
    $region35: #{tpu_custom_call.1} parent=1 // pred_check_branch
      %101 = sbr.rel (0) target = $region37
    $region36: #{tpu_custom_call.1} parent=1 // pred_region
      %103 = dma.done [#allocation3], 512
    $region37: #{tpu_custom_call.1} parent=1 // pred_fallthru
      _
    // Predicated region
    $region38: #{tpu_custom_call.1} parent=1 // pred_check
      _
    $region39: #{tpu_custom_call.1} parent=1 // pred_check_branch
      %105 = sbr.rel (0) target = $region41
    $region40: #{tpu_custom_call.1} parent=1 // pred_region
      %107 = dma.done [#allocation6], 512
    $region41: #{tpu_custom_call.1} parent=1 // pred_fallthru
      _
    // Predicated region
    $region42: #{tpu_custom_call.1} parent=1 // pred_check
      _
    $region43: #{tpu_custom_call.1} parent=1 // pred_check_branch
      %109 = sbr.rel (0) target = $region45
    $region44: #{tpu_custom_call.1} parent=1 // pred_region
      %111 = dma.done [#allocation6], 256
    $region45: #{tpu_custom_call.1} parent=1 // pred_fallthru
      _
    // Predicated region
    $region46: #{tpu_custom_call.1} parent=1 // pred_check
      _
    $region47: #{tpu_custom_call.1} parent=1 // pred_check_branch
      %113 = sbr.rel (0) target = $region49
    $region48: #{tpu_custom_call.1} parent=1 // pred_region
      %115 = dma.done [#allocation9], 256
    $region49: #{tpu_custom_call.1} parent=1 // pred_fallthru
      _
    // Predicated region
    $region50: #{tpu_custom_call.1} parent=1 // pred_check
      _
    $region51: #{tpu_custom_call.1} parent=1 // pred_check_branch
      %117 = sbr.rel (0) target = $region53
    $region52: #{tpu_custom_call.1} parent=1 // pred_region
      %119 = dma.done [#allocation9], 512
    $region53: #{tpu_custom_call.1} parent=1 // pred_fallthru
      _
    // Predicated region
    $region54: #{tpu_custom_call.1} parent=1 // pred_check
      _
    $region55: #{tpu_custom_call.1} parent=1 // pred_check_branch
      %121 = sbr.rel (0) target = $region57
    $region56: #{tpu_custom_call.1} parent=1 // pred_region
      %123 = dma.done [#allocation12], 512
    $region57: #{tpu_custom_call.1} parent=1 // pred_fallthru
      _
    %v125 = vld [vmem:[#allocation2] sm:$0xf]
    %v126 = vld [vmem:[#allocation2 + $0x4] sm:$0xf]
    %v127 = vld [vmem:[#allocation2 + $0x8] sm:$0xf]
    %v128 = vld [vmem:[#allocation2 + $0xc] sm:$0xf]
    %v129 = vld [vmem:[#allocation2 + $0x10] sm:$0xf]
    %v130 = vld [vmem:[#allocation2 + $0x14] sm:$0xf]
    %v131 = vld [vmem:[#allocation2 + $0x18] sm:$0xf]
    %v132 = vld [vmem:[#allocation2 + $0x1c] sm:$0xf]
    %v133 = vld [vmem:[#allocation7] sm:$0xf]
    %v134 = vld [vmem:[#allocation7 + $0x4] sm:$0xf]
    %v135 = vld [vmem:[#allocation7 + $0x8] sm:$0xf]
    %v136 = vld [vmem:[#allocation7 + $0xc] sm:$0xf]
    %v137 = vld [vmem:[%s3] sm:$0x1]
    %v139 = vperm.slane %v137, 0
    %v149 = vunpack.c.l.b16 %v125
    %v150 = vunpack.c.l.b16 %v126
    %v151 = vunpack.c.l.b16 %v127
    %v152 = vunpack.c.l.b16 %v128
    %v153 = vunpack.c.l.b16 %v129
    %v154 = vunpack.c.l.b16 %v130
    %v155 = vunpack.c.l.b16 %v131
    %v156 = vunpack.c.l.b16 %v132
    %v157 = vpack.c.b16 %v150, %v149
    %v158 = vpack.c.b16 %v152, %v151
    %v159 = vpack.c.b16 %v154, %v153
    %v160 = vpack.c.b16 %v156, %v155
    %v165 = vunpack.c.l.b16 %v133
    %v166 = vunpack.c.l.b16 %v134
    %v167 = vunpack.c.l.b16 %v135
    %v168 = vunpack.c.l.b16 %v136
    %v169 = vpack.c.b16 %v166, %v165
    %v170 = vpack.c.b16 %v168, %v167
    %vm173 = vcmask 261120
    %v175 = vsel %vm173, %v157, 0
    %v178 = vsel %vm173, %v158, 0
    %v181 = vsel %vm173, %v159, 0
    %v184 = vsel %vm173, %v160, 0
    %186 = vmatpush.bf16.msra.mxu0 0
    %187 = vmatpush.bf16.msra.mxu0 0
    %188 = vmatpush.bf16.msra.mxu0 0
    %189 = vmatpush.bf16.msra.mxu0 0
    %190 = vmatpush.bf16.msra.mxu0 0
    %191 = vmatpush.bf16.msra.mxu0 0
    %192 = vmatpush.bf16.msra.mxu0 %v170
    %193 = vmatpush.bf16.msra.mxu0 %v169
    %194 = vmatmul.bf16.gmra.mxu0 %v175
    %v195 = vpop.f32.mrf.mxu0
    %v196 = vadd.f32 %v139, %v195
    %v197 = vpop.f32.mrf.mxu0
    %v198 = vadd.f32 %v139, %v197
    %199 = vmatmul.bf16.gmra.mxu0 %v178
    %v200 = vpop.f32.mrf.mxu0
    %v201 = vadd.f32 %v139, %v200
    %v202 = vpop.f32.mrf.mxu0
    %v203 = vadd.f32 %v139, %v202
    %204 = vmatmul.bf16.gmra.mxu0 %v181
    %v205 = vpop.f32.mrf.mxu0
    %v206 = vadd.f32 %v139, %v205
    %v207 = vpop.f32.mrf.mxu0
    %v208 = vadd.f32 %v139, %v207
    %209 = vmatmul.bf16.gmra.mxu0 %v184
    %v210 = vpop.f32.mrf.mxu0
    %v211 = vadd.f32 %v139, %v210
    %v212 = vpop.f32.mrf.mxu0
    %v213 = vadd.f32 %v139, %v212
    %214 = vdwg.mxu0
    %v215 = vpack.c.bf16 %v196, %v196
    %v216 = vpack.c.bf16 %v198, %v198
    %v217 = vpack.c.bf16 %v201, %v201
    %v218 = vpack.c.bf16 %v203, %v203
    %v219 = vpack.c.bf16 %v206, %v206
    %v220 = vpack.c.bf16 %v208, %v208
    %v221 = vpack.c.bf16 %v211, %v211
    %v222 = vpack.c.bf16 %v213, %v213
    %v223 = vld [vmem:[#allocation5] sm:$0xf]
    %v224 = vld [vmem:[#allocation5 + $0x4] sm:$0xf]
    %v225 = vld [vmem:[#allocation5 + $0x8] sm:$0xf]
    %v226 = vld [vmem:[#allocation5 + $0xc] sm:$0xf]
    %v227 = vld [vmem:[#allocation5 + $0x10] sm:$0xf]
    %v228 = vld [vmem:[#allocation5 + $0x14] sm:$0xf]
    %v229 = vld [vmem:[#allocation5 + $0x18] sm:$0xf]
    %v230 = vld [vmem:[#allocation5 + $0x1c] sm:$0xf]
    %v231 = vld [vmem:[#allocation10] sm:$0xff]
    %v232 = vld [vmem:[#allocation10 + $0x8] sm:$0xff]
    %v233 = vld [vmem:[#allocation10 + $0x10] sm:$0xff]
    %v234 = vld [vmem:[#allocation10 + $0x18] sm:$0xff]
    %vm235 = vcmask 64512
    %v237 = vsel %vm235, %v223, 0
    %v240 = vsel %vm235, %v215, 0
    %242 = vmatpush.bf16.xpose.msra.mxu0 0
    %243 = vmatpush.bf16.xpose.msra.mxu0 0
    %244 = vmatpush.bf16.xpose.msra.mxu0 0
    %245 = vmatpush.bf16.xpose.msra.mxu0 0
    %246 = vmatpush.bf16.xpose.msra.mxu0 0
    %247 = vmatpush.bf16.xpose.msra.mxu0 0
    %248 = vmatpush.bf16.xpose.msra.mxu0 0
    %249 = vmatpush.bf16.xpose.msra.mxu0 %v240
    %250 = vmatmul.bf16.gmra.mxu0 %v237
    %v251 = vpop.f32.mrf.mxu0
    %v252 = vadd.f32 %v231, %v251
    %v253 = vpop.f32.mrf.mxu0
    %254 = vdwg.mxu0
    %v256 = vsel %vm235, %v224, 0
    %v259 = vsel %vm235, %v216, 0
    %261 = vmatpush.bf16.xpose.msra.mxu0 0
    %262 = vmatpush.bf16.xpose.msra.mxu0 0
    %263 = vmatpush.bf16.xpose.msra.mxu0 0
    %264 = vmatpush.bf16.xpose.msra.mxu0 0
    %265 = vmatpush.bf16.xpose.msra.mxu0 0
    %266 = vmatpush.bf16.xpose.msra.mxu0 0
    %267 = vmatpush.bf16.xpose.msra.mxu0 0
    %268 = vmatpush.bf16.xpose.msra.mxu0 %v259
    %269 = vmatmul.bf16.gmra.mxu0 %v256
    %v270 = vpop.f32.mrf.mxu0
    %v271 = vadd.f32 %v231, %v270
    %v272 = vpop.f32.mrf.mxu0
    %273 = vdwg.mxu0
    %v275 = vsel %vm235, %v225, 0
    %v278 = vsel %vm235, %v217, 0
    %280 = vmatpush.bf16.xpose.msra.mxu0 0
    %281 = vmatpush.bf16.xpose.msra.mxu0 0
    %282 = vmatpush.bf16.xpose.msra.mxu0 0
    %283 = vmatpush.bf16.xpose.msra.mxu0 0
    %284 = vmatpush.bf16.xpose.msra.mxu0 0
    %285 = vmatpush.bf16.xpose.msra.mxu0 0
    %286 = vmatpush.bf16.xpose.msra.mxu0 0
    %287 = vmatpush.bf16.xpose.msra.mxu0 %v278
    %288 = vmatmul.bf16.gmra.mxu0 %v275
    %v289 = vpop.f32.mrf.mxu0
    %v290 = vadd.f32 %v231, %v289
    %v291 = vpop.f32.mrf.mxu0
    %292 = vdwg.mxu0
    %v294 = vsel %vm235, %v226, 0
    %v297 = vsel %vm235, %v218, 0
    %299 = vmatpush.bf16.xpose.msra.mxu0 0
    %300 = vmatpush.bf16.xpose.msra.mxu0 0
    %301 = vmatpush.bf16.xpose.msra.mxu0 0
    %302 = vmatpush.bf16.xpose.msra.mxu0 0
    %303 = vmatpush.bf16.xpose.msra.mxu0 0
    %304 = vmatpush.bf16.xpose.msra.mxu0 0
    %305 = vmatpush.bf16.xpose.msra.mxu0 0
    %306 = vmatpush.bf16.xpose.msra.mxu0 %v297
    %307 = vmatmul.bf16.gmra.mxu0 %v294
    %v308 = vpop.f32.mrf.mxu0
    %v309 = vadd.f32 %v231, %v308
    %v310 = vpop.f32.mrf.mxu0
    %311 = vdwg.mxu0
    %v313 = vsel %vm235, %v227, 0
    %v316 = vsel %vm235, %v219, 0
    %318 = vmatpush.bf16.xpose.msra.mxu0 0
    %319 = vmatpush.bf16.xpose.msra.mxu0 0
    %320 = vmatpush.bf16.xpose.msra.mxu0 0
    %321 = vmatpush.bf16.xpose.msra.mxu0 0
    %322 = vmatpush.bf16.xpose.msra.mxu0 0
    %323 = vmatpush.bf16.xpose.msra.mxu0 0
    %324 = vmatpush.bf16.xpose.msra.mxu0 0
    %325 = vmatpush.bf16.xpose.msra.mxu0 %v316
    %326 = vmatmul.bf16.gmra.mxu0 %v313
    %v327 = vpop.f32.mrf.mxu0
    %v328 = vadd.f32 %v231, %v327
    %v329 = vpop.f32.mrf.mxu0
    %330 = vdwg.mxu0
    %v332 = vsel %vm235, %v228, 0
    %v335 = vsel %vm235, %v220, 0
    %337 = vmatpush.bf16.xpose.msra.mxu0 0
    %338 = vmatpush.bf16.xpose.msra.mxu0 0
    %339 = vmatpush.bf16.xpose.msra.mxu0 0
    %340 = vmatpush.bf16.xpose.msra.mxu0 0
    %341 = vmatpush.bf16.xpose.msra.mxu0 0
    %342 = vmatpush.bf16.xpose.msra.mxu0 0
    %343 = vmatpush.bf16.xpose.msra.mxu0 0
    %344 = vmatpush.bf16.xpose.msra.mxu0 %v335
    %345 = vmatmul.bf16.gmra.mxu0 %v332
    %v346 = vpop.f32.mrf.mxu0
    %v347 = vadd.f32 %v231, %v346
    %v348 = vpop.f32.mrf.mxu0
    %349 = vdwg.mxu0
    %v351 = vsel %vm235, %v229, 0
    %v354 = vsel %vm235, %v221, 0
    %356 = vmatpush.bf16.xpose.msra.mxu0 0
    %357 = vmatpush.bf16.xpose.msra.mxu0 0
    %358 = vmatpush.bf16.xpose.msra.mxu0 0
    %359 = vmatpush.bf16.xpose.msra.mxu0 0
    %360 = vmatpush.bf16.xpose.msra.mxu0 0
    %361 = vmatpush.bf16.xpose.msra.mxu0 0
    %362 = vmatpush.bf16.xpose.msra.mxu0 0
    %363 = vmatpush.bf16.xpose.msra.mxu0 %v354
    %364 = vmatmul.bf16.gmra.mxu0 %v351
    %v365 = vpop.f32.mrf.mxu0
    %v366 = vadd.f32 %v231, %v365
    %v367 = vpop.f32.mrf.mxu0
    %368 = vdwg.mxu0
    %v370 = vsel %vm235, %v230, 0
    %v373 = vsel %vm235, %v222, 0
    %375 = vmatpush.bf16.xpose.msra.mxu0 0
    %376 = vmatpush.bf16.xpose.msra.mxu0 0
    %377 = vmatpush.bf16.xpose.msra.mxu0 0
    %378 = vmatpush.bf16.xpose.msra.mxu0 0
    %379 = vmatpush.bf16.xpose.msra.mxu0 0
    %380 = vmatpush.bf16.xpose.msra.mxu0 0
    %381 = vmatpush.bf16.xpose.msra.mxu0 0
    %382 = vmatpush.bf16.xpose.msra.mxu0 %v373
    %383 = vmatmul.bf16.gmra.mxu0 %v370
    %v384 = vpop.f32.mrf.mxu0
    %v385 = vadd.f32 %v231, %v384
    %v386 = vpop.f32.mrf.mxu0
    %387 = vdwg.mxu0
    %v388 = vsel %vm235, %v252, -inf
    %389 = vmax.xlane.f32.xlu0 %v388
    %v390 = vpop.xlane.xlu0 %389
    %v391 = vsel %vm235, %v271, -inf
    %392 = vmax.xlane.f32.xlu0 %v391
    %v393 = vpop.xlane.xlu0 %392
    %v394 = vsel %vm235, %v290, -inf
    %395 = vmax.xlane.f32.xlu0 %v394
    %v396 = vpop.xlane.xlu0 %395
    %v397 = vsel %vm235, %v309, -inf
    %398 = vmax.xlane.f32.xlu0 %v397
    %v399 = vpop.xlane.xlu0 %398
    %v400 = vsel %vm235, %v328, -inf
    %401 = vmax.xlane.f32.xlu0 %v400
    %v402 = vpop.xlane.xlu0 %401
    %v403 = vsel %vm235, %v347, -inf
    %404 = vmax.xlane.f32.xlu0 %v403
    %v405 = vpop.xlane.xlu0 %404
    %v406 = vsel %vm235, %v366, -inf
    %407 = vmax.xlane.f32.xlu0 %v406
    %v408 = vpop.xlane.xlu0 %407
    %v409 = vsel %vm235, %v385, -inf
    %410 = vmax.xlane.f32.xlu0 %v409
    %v411 = vpop.xlane.xlu0 %410
    %v412 = vsub.f32 %v252, %v390
    %v413 = vsub.f32 %v271, %v393
    %v414 = vsub.f32 %v290, %v396
    %v415 = vsub.f32 %v309, %v399
    %v416 = vsub.f32 %v328, %v402
    %v417 = vsub.f32 %v347, %v405
    %v418 = vsub.f32 %v366, %v408
    %v419 = vsub.f32 %v385, %v411
    %v420 = vmul.f32 %v412, 1.442695
    %v421 = vpow.pop %v420
    %v422 = vmul.f32 %v413, 1.442695
    %v423 = vpow.pop %v422
    %v424 = vmul.f32 %v414, 1.442695
    %v425 = vpow.pop %v424
    %v426 = vmul.f32 %v415, 1.442695
    %v427 = vpow.pop %v426
    %v428 = vmul.f32 %v416, 1.442695
    %v429 = vpow.pop %v428
    %v430 = vmul.f32 %v417, 1.442695
    %v431 = vpow.pop %v430
    %v432 = vmul.f32 %v418, 1.442695
    %v433 = vpow.pop %v432
    %v434 = vmul.f32 %v419, 1.442695
    %v435 = vpow.pop %v434
    %v436 = vsel %vm235, %v421, 0.0
    %437 = vadd.xlane.f32.xlu0 %v436
    %v438 = vpop.xlane.xlu0 %437
    %v439 = vsel %vm235, %v423, 0.0
    %440 = vadd.xlane.f32.xlu0 %v439
    %v441 = vpop.xlane.xlu0 %440
    %v442 = vsel %vm235, %v425, 0.0
    %443 = vadd.xlane.f32.xlu0 %v442
    %v444 = vpop.xlane.xlu0 %443
    %v445 = vsel %vm235, %v427, 0.0
    %446 = vadd.xlane.f32.xlu0 %v445
    %v447 = vpop.xlane.xlu0 %446
    %v448 = vsel %vm235, %v429, 0.0
    %449 = vadd.xlane.f32.xlu0 %v448
    %v450 = vpop.xlane.xlu0 %449
    %v451 = vsel %vm235, %v431, 0.0
    %452 = vadd.xlane.f32.xlu0 %v451
    %v453 = vpop.xlane.xlu0 %452
    %v454 = vsel %vm235, %v433, 0.0
    %455 = vadd.xlane.f32.xlu0 %v454
    %v456 = vpop.xlane.xlu0 %455
    %v457 = vsel %vm235, %v435, 0.0
    %458 = vadd.xlane.f32.xlu0 %v457
    %v459 = vpop.xlane.xlu0 %458
    %v460 = vpack.c.bf16 %v421, %v421
    %v461 = vpack.c.bf16 %v423, %v423
    %v462 = vpack.c.bf16 %v425, %v425
    %v463 = vpack.c.bf16 %v427, %v427
    %v464 = vpack.c.bf16 %v429, %v429
    %v465 = vpack.c.bf16 %v431, %v431
    %v466 = vpack.c.bf16 %v433, %v433
    %v467 = vpack.c.bf16 %v435, %v435
    %v469 = vunpack.c.l.b16 %v215
    %v470 = vpack.c.b16 %v469, %v469
    %471 = vrot.lane.b32.xlu0 %v470, 96
    %v472 = vpop.permute.xlu0 %471
    %v474 = vsel %vm235, %v460, 0
    %vm476 = vcmask 1043456
    %v478 = vsel %vm476, %v472, 0
    %480 = vmatpush.bf16.msra.mxu0 0
    %481 = vmatpush.bf16.msra.mxu0 0
    %482 = vmatpush.bf16.msra.mxu0 0
    %483 = vmatpush.bf16.msra.mxu0 0
    %484 = vmatpush.bf16.msra.mxu0 0
    %485 = vmatpush.bf16.msra.mxu0 0
    %486 = vmatpush.bf16.msra.mxu0 0
    %487 = vmatpush.bf16.msra.mxu0 %v478
    %488 = vmatmul.bf16.gmra.mxu0 %v474
    %v489 = vpop.f32.mrf.mxu0
    %v490 = vadd.f32 0.0, %v489
    %v491 = vpop.f32.mrf.mxu0
    %492 = vdwg.mxu0
    %v494 = vunpack.c.l.b16 %v216
    %v495 = vpack.c.b16 %v494, %v494
    %496 = vrot.lane.b32.xlu0 %v495, 96
    %v497 = vpop.permute.xlu0 %496
    %v499 = vsel %vm235, %v461, 0
    %v502 = vsel %vm476, %v497, 0
    %504 = vmatpush.bf16.msra.mxu0 0
    %505 = vmatpush.bf16.msra.mxu0 0
    %506 = vmatpush.bf16.msra.mxu0 0
    %507 = vmatpush.bf16.msra.mxu0 0
    %508 = vmatpush.bf16.msra.mxu0 0
    %509 = vmatpush.bf16.msra.mxu0 0
    %510 = vmatpush.bf16.msra.mxu0 0
    %511 = vmatpush.bf16.msra.mxu0 %v502
    %512 = vmatmul.bf16.gmra.mxu0 %v499
    %v513 = vpop.f32.mrf.mxu0
    %v514 = vadd.f32 0.0, %v513
    %v515 = vpop.f32.mrf.mxu0
    %516 = vdwg.mxu0
    %v518 = vunpack.c.l.b16 %v217
    %v519 = vpack.c.b16 %v518, %v518
    %520 = vrot.lane.b32.xlu0 %v519, 96
    %v521 = vpop.permute.xlu0 %520
    %v523 = vsel %vm235, %v462, 0
    %v526 = vsel %vm476, %v521, 0
    %528 = vmatpush.bf16.msra.mxu0 0
    %529 = vmatpush.bf16.msra.mxu0 0
    %530 = vmatpush.bf16.msra.mxu0 0
    %531 = vmatpush.bf16.msra.mxu0 0
    %532 = vmatpush.bf16.msra.mxu0 0
    %533 = vmatpush.bf16.msra.mxu0 0
    %534 = vmatpush.bf16.msra.mxu0 0
    %535 = vmatpush.bf16.msra.mxu0 %v526
    %536 = vmatmul.bf16.gmra.mxu0 %v523
    %v537 = vpop.f32.mrf.mxu0
    %v538 = vadd.f32 0.0, %v537
    %v539 = vpop.f32.mrf.mxu0
    %540 = vdwg.mxu0
    %v542 = vunpack.c.l.b16 %v218
    %v543 = vpack.c.b16 %v542, %v542
    %544 = vrot.lane.b32.xlu0 %v543, 96
    %v545 = vpop.permute.xlu0 %544
    %v547 = vsel %vm235, %v463, 0
    %v550 = vsel %vm476, %v545, 0
    %552 = vmatpush.bf16.msra.mxu0 0
    %553 = vmatpush.bf16.msra.mxu0 0
    %554 = vmatpush.bf16.msra.mxu0 0
    %555 = vmatpush.bf16.msra.mxu0 0
    %556 = vmatpush.bf16.msra.mxu0 0
    %557 = vmatpush.bf16.msra.mxu0 0
    %558 = vmatpush.bf16.msra.mxu0 0
    %559 = vmatpush.bf16.msra.mxu0 %v550
    %560 = vmatmul.bf16.gmra.mxu0 %v547
    %v561 = vpop.f32.mrf.mxu0
    %v562 = vadd.f32 0.0, %v561
    %v563 = vpop.f32.mrf.mxu0
    %564 = vdwg.mxu0
    %v566 = vunpack.c.l.b16 %v219
    %v567 = vpack.c.b16 %v566, %v566
    %568 = vrot.lane.b32.xlu0 %v567, 96
    %v569 = vpop.permute.xlu0 %568
    %v571 = vsel %vm235, %v464, 0
    %v574 = vsel %vm476, %v569, 0
    %576 = vmatpush.bf16.msra.mxu0 0
    %577 = vmatpush.bf16.msra.mxu0 0
    %578 = vmatpush.bf16.msra.mxu0 0
    %579 = vmatpush.bf16.msra.mxu0 0
    %580 = vmatpush.bf16.msra.mxu0 0
    %581 = vmatpush.bf16.msra.mxu0 0
    %582 = vmatpush.bf16.msra.mxu0 0
    %583 = vmatpush.bf16.msra.mxu0 %v574
    %584 = vmatmul.bf16.gmra.mxu0 %v571
    %v585 = vpop.f32.mrf.mxu0
    %v586 = vadd.f32 0.0, %v585
    %v587 = vpop.f32.mrf.mxu0
    %588 = vdwg.mxu0
    %v590 = vunpack.c.l.b16 %v220
    %v591 = vpack.c.b16 %v590, %v590
    %592 = vrot.lane.b32.xlu0 %v591, 96
    %v593 = vpop.permute.xlu0 %592
    %v595 = vsel %vm235, %v465, 0
    %v598 = vsel %vm476, %v593, 0
    %600 = vmatpush.bf16.msra.mxu0 0
    %601 = vmatpush.bf16.msra.mxu0 0
    %602 = vmatpush.bf16.msra.mxu0 0
    %603 = vmatpush.bf16.msra.mxu0 0
    %604 = vmatpush.bf16.msra.mxu0 0
    %605 = vmatpush.bf16.msra.mxu0 0
    %606 = vmatpush.bf16.msra.mxu0 0
    %607 = vmatpush.bf16.msra.mxu0 %v598
    %608 = vmatmul.bf16.gmra.mxu0 %v595
    %v609 = vpop.f32.mrf.mxu0
    %v610 = vadd.f32 0.0, %v609
    %v611 = vpop.f32.mrf.mxu0
    %612 = vdwg.mxu0
    %v614 = vunpack.c.l.b16 %v221
    %v615 = vpack.c.b16 %v614, %v614
    %616 = vrot.lane.b32.xlu0 %v615, 96
    %v617 = vpop.permute.xlu0 %616
    %v619 = vsel %vm235, %v466, 0
    %v622 = vsel %vm476, %v617, 0
    %624 = vmatpush.bf16.msra.mxu0 0
    %625 = vmatpush.bf16.msra.mxu0 0
    %626 = vmatpush.bf16.msra.mxu0 0
    %627 = vmatpush.bf16.msra.mxu0 0
    %628 = vmatpush.bf16.msra.mxu0 0
    %629 = vmatpush.bf16.msra.mxu0 0
    %630 = vmatpush.bf16.msra.mxu0 0
    %631 = vmatpush.bf16.msra.mxu0 %v622
    %632 = vmatmul.bf16.gmra.mxu0 %v619
    %v633 = vpop.f32.mrf.mxu0
    %v634 = vadd.f32 0.0, %v633
    %v635 = vpop.f32.mrf.mxu0
    %636 = vdwg.mxu0
    %v638 = vunpack.c.l.b16 %v222
    %v639 = vpack.c.b16 %v638, %v638
    %640 = vrot.lane.b32.xlu0 %v639, 96
    %v641 = vpop.permute.xlu0 %640
    %v643 = vsel %vm235, %v467, 0
    %v646 = vsel %vm476, %v641, 0
    %648 = vmatpush.bf16.msra.mxu0 0
    %649 = vmatpush.bf16.msra.mxu0 0
    %650 = vmatpush.bf16.msra.mxu0 0
    %651 = vmatpush.bf16.msra.mxu0 0
    %652 = vmatpush.bf16.msra.mxu0 0
    %653 = vmatpush.bf16.msra.mxu0 0
    %654 = vmatpush.bf16.msra.mxu0 0
    %655 = vmatpush.bf16.msra.mxu0 %v646
    %656 = vmatmul.bf16.gmra.mxu0 %v643
    %v657 = vpop.f32.mrf.mxu0
    %v658 = vadd.f32 0.0, %v657
    %v659 = vpop.f32.mrf.mxu0
    %660 = vdwg.mxu0
    %v661 = vrcp.pop %v438
    %v662 = vrcp.pop %v441
    %v663 = vrcp.pop %v444
    %v664 = vrcp.pop %v447
    %v665 = vrcp.pop %v450
    %v666 = vrcp.pop %v453
    %v667 = vrcp.pop %v456
    %v668 = vrcp.pop %v459
    %v669 = vmul.f32 %v490, %v661
    %v670 = vmul.f32 %v514, %v662
    %v671 = vmul.f32 %v538, %v663
    %v672 = vmul.f32 %v562, %v664
    %v673 = vmul.f32 %v586, %v665
    %v674 = vmul.f32 %v610, %v666
    %v675 = vmul.f32 %v634, %v667
    %v676 = vmul.f32 %v658, %v668
    %v678 = vunpack.c.l.b16 %v223
    %v679 = vpack.c.b16 %v678, %v678
    %680 = vrot.lane.b32.xlu0 %v679, 120
    %v681 = vpop.permute.xlu0 %680
    %682 = vrot.lane.b32.xlu0 %v470, 120
    %v683 = vpop.permute.xlu0 %682
    %v685 = vsel %vm235, %v681, 0
    %v688 = vsel %vm235, %v683, 0
    %690 = vmatpush.bf16.xpose.msra.mxu0 0
    %691 = vmatpush.bf16.xpose.msra.mxu0 0
    %692 = vmatpush.bf16.xpose.msra.mxu0 0
    %693 = vmatpush.bf16.xpose.msra.mxu0 0
    %694 = vmatpush.bf16.xpose.msra.mxu0 0
    %695 = vmatpush.bf16.xpose.msra.mxu0 0
    %696 = vmatpush.bf16.xpose.msra.mxu0 0
    %697 = vmatpush.bf16.xpose.msra.mxu0 %v688
    %698 = vmatmul.bf16.gmra.mxu0 %v685
    %v699 = vpop.f32.mrf.mxu0
    %v700 = vadd.f32 %v232, %v699
    %v701 = vpop.f32.mrf.mxu0
    %702 = vdwg.mxu0
    %v704 = vunpack.c.l.b16 %v224
    %v705 = vpack.c.b16 %v704, %v704
    %706 = vrot.lane.b32.xlu0 %v705, 120
    %v707 = vpop.permute.xlu0 %706
    %708 = vrot.lane.b32.xlu0 %v495, 120
    %v709 = vpop.permute.xlu0 %708
    %v711 = vsel %vm235, %v707, 0
    %v714 = vsel %vm235, %v709, 0
    %716 = vmatpush.bf16.xpose.msra.mxu0 0
    %717 = vmatpush.bf16.xpose.msra.mxu0 0
    %718 = vmatpush.bf16.xpose.msra.mxu0 0
    %719 = vmatpush.bf16.xpose.msra.mxu0 0
    %720 = vmatpush.bf16.xpose.msra.mxu0 0
    %721 = vmatpush.bf16.xpose.msra.mxu0 0
    %722 = vmatpush.bf16.xpose.msra.mxu0 0
    %723 = vmatpush.bf16.xpose.msra.mxu0 %v714
    %724 = vmatmul.bf16.gmra.mxu0 %v711
    %v725 = vpop.f32.mrf.mxu0
    %v726 = vadd.f32 %v232, %v725
    %v727 = vpop.f32.mrf.mxu0
    %728 = vdwg.mxu0
    %v730 = vunpack.c.l.b16 %v225
    %v731 = vpack.c.b16 %v730, %v730
    %732 = vrot.lane.b32.xlu0 %v731, 120
    %v733 = vpop.permute.xlu0 %732
    %734 = vrot.lane.b32.xlu0 %v519, 120
    %v735 = vpop.permute.xlu0 %734
    %v737 = vsel %vm235, %v733, 0
    %v740 = vsel %vm235, %v735, 0
    %742 = vmatpush.bf16.xpose.msra.mxu0 0
    %743 = vmatpush.bf16.xpose.msra.mxu0 0
    %744 = vmatpush.bf16.xpose.msra.mxu0 0
    %745 = vmatpush.bf16.xpose.msra.mxu0 0
    %746 = vmatpush.bf16.xpose.msra.mxu0 0
    %747 = vmatpush.bf16.xpose.msra.mxu0 0
    %748 = vmatpush.bf16.xpose.msra.mxu0 0
    %749 = vmatpush.bf16.xpose.msra.mxu0 %v740
    %750 = vmatmul.bf16.gmra.mxu0 %v737
    %v751 = vpop.f32.mrf.mxu0
    %v752 = vadd.f32 %v232, %v751
    %v753 = vpop.f32.mrf.mxu0
    %754 = vdwg.mxu0
    %v756 = vunpack.c.l.b16 %v226
    %v757 = vpack.c.b16 %v756, %v756
    %758 = vrot.lane.b32.xlu0 %v757, 120
    %v759 = vpop.permute.xlu0 %758
    %760 = vrot.lane.b32.xlu0 %v543, 120
    %v761 = vpop.permute.xlu0 %760
    %v763 = vsel %vm235, %v759, 0
    %v766 = vsel %vm235, %v761, 0
    %768 = vmatpush.bf16.xpose.msra.mxu0 0
    %769 = vmatpush.bf16.xpose.msra.mxu0 0
    %770 = vmatpush.bf16.xpose.msra.mxu0 0
    %771 = vmatpush.bf16.xpose.msra.mxu0 0
    %772 = vmatpush.bf16.xpose.msra.mxu0 0
    %773 = vmatpush.bf16.xpose.msra.mxu0 0
    %774 = vmatpush.bf16.xpose.msra.mxu0 0
    %775 = vmatpush.bf16.xpose.msra.mxu0 %v766
    %776 = vmatmul.bf16.gmra.mxu0 %v763
    %v777 = vpop.f32.mrf.mxu0
    %v778 = vadd.f32 %v232, %v777
    %v779 = vpop.f32.mrf.mxu0
    %780 = vdwg.mxu0
    %v782 = vunpack.c.l.b16 %v227
    %v783 = vpack.c.b16 %v782, %v782
    %784 = vrot.lane.b32.xlu0 %v783, 120
    %v785 = vpop.permute.xlu0 %784
    %786 = vrot.lane.b32.xlu0 %v567, 120
    %v787 = vpop.permute.xlu0 %786
    %v789 = vsel %vm235, %v785, 0
    %v792 = vsel %vm235, %v787, 0
    %794 = vmatpush.bf16.xpose.msra.mxu0 0
    %795 = vmatpush.bf16.xpose.msra.mxu0 0
    %796 = vmatpush.bf16.xpose.msra.mxu0 0
    %797 = vmatpush.bf16.xpose.msra.mxu0 0
    %798 = vmatpush.bf16.xpose.msra.mxu0 0
    %799 = vmatpush.bf16.xpose.msra.mxu0 0
    %800 = vmatpush.bf16.xpose.msra.mxu0 0
    %801 = vmatpush.bf16.xpose.msra.mxu0 %v792
    %802 = vmatmul.bf16.gmra.mxu0 %v789
    %v803 = vpop.f32.mrf.mxu0
    %v804 = vadd.f32 %v232, %v803
    %v805 = vpop.f32.mrf.mxu0
    %806 = vdwg.mxu0
    %v808 = vunpack.c.l.b16 %v228
    %v809 = vpack.c.b16 %v808, %v808
    %810 = vrot.lane.b32.xlu0 %v809, 120
    %v811 = vpop.permute.xlu0 %810
    %812 = vrot.lane.b32.xlu0 %v591, 120
    %v813 = vpop.permute.xlu0 %812
    %v815 = vsel %vm235, %v811, 0
    %v818 = vsel %vm235, %v813, 0
    %820 = vmatpush.bf16.xpose.msra.mxu0 0
    %821 = vmatpush.bf16.xpose.msra.mxu0 0
    %822 = vmatpush.bf16.xpose.msra.mxu0 0
    %823 = vmatpush.bf16.xpose.msra.mxu0 0
    %824 = vmatpush.bf16.xpose.msra.mxu0 0
    %825 = vmatpush.bf16.xpose.msra.mxu0 0
    %826 = vmatpush.bf16.xpose.msra.mxu0 0
    %827 = vmatpush.bf16.xpose.msra.mxu0 %v818
    %828 = vmatmul.bf16.gmra.mxu0 %v815
    %v829 = vpop.f32.mrf.mxu0
    %v830 = vadd.f32 %v232, %v829
    %v831 = vpop.f32.mrf.mxu0
    %832 = vdwg.mxu0
    %v834 = vunpack.c.l.b16 %v229
    %v835 = vpack.c.b16 %v834, %v834
    %836 = vrot.lane.b32.xlu0 %v835, 120
    %v837 = vpop.permute.xlu0 %836
    %838 = vrot.lane.b32.xlu0 %v615, 120
    %v839 = vpop.permute.xlu0 %838
    %v841 = vsel %vm235, %v837, 0
    %v844 = vsel %vm235, %v839, 0
    %846 = vmatpush.bf16.xpose.msra.mxu0 0
    %847 = vmatpush.bf16.xpose.msra.mxu0 0
    %848 = vmatpush.bf16.xpose.msra.mxu0 0
    %849 = vmatpush.bf16.xpose.msra.mxu0 0
    %850 = vmatpush.bf16.xpose.msra.mxu0 0
    %851 = vmatpush.bf16.xpose.msra.mxu0 0
    %852 = vmatpush.bf16.xpose.msra.mxu0 0
    %853 = vmatpush.bf16.xpose.msra.mxu0 %v844
    %854 = vmatmul.bf16.gmra.mxu0 %v841
    %v855 = vpop.f32.mrf.mxu0
    %v856 = vadd.f32 %v232, %v855
    %v857 = vpop.f32.mrf.mxu0
    %858 = vdwg.mxu0
    %v860 = vunpack.c.l.b16 %v230
    %v861 = vpack.c.b16 %v860, %v860
    %862 = vrot.lane.b32.xlu0 %v861, 120
    %v863 = vpop.permute.xlu0 %862
    %864 = vrot.lane.b32.xlu0 %v639, 120
    %v865 = vpop.permute.xlu0 %864
    %v867 = vsel %vm235, %v863, 0
    %v870 = vsel %vm235, %v865, 0
    %872 = vmatpush.bf16.xpose.msra.mxu0 0
    %873 = vmatpush.bf16.xpose.msra.mxu0 0
    %874 = vmatpush.bf16.xpose.msra.mxu0 0
    %875 = vmatpush.bf16.xpose.msra.mxu0 0
    %876 = vmatpush.bf16.xpose.msra.mxu0 0
    %877 = vmatpush.bf16.xpose.msra.mxu0 0
    %878 = vmatpush.bf16.xpose.msra.mxu0 0
    %879 = vmatpush.bf16.xpose.msra.mxu0 %v870
    %880 = vmatmul.bf16.gmra.mxu0 %v867
    %v881 = vpop.f32.mrf.mxu0
    %v882 = vadd.f32 %v232, %v881
    %v883 = vpop.f32.mrf.mxu0
    %884 = vdwg.mxu0
    %v885 = vsel %vm235, %v700, -inf
    %886 = vmax.xlane.f32.xlu0 %v885
    %v887 = vpop.xlane.xlu0 %886
    %v888 = vsel %vm235, %v726, -inf
    %889 = vmax.xlane.f32.xlu0 %v888
    %v890 = vpop.xlane.xlu0 %889
    %v891 = vsel %vm235, %v752, -inf
    %892 = vmax.xlane.f32.xlu0 %v891
    %v893 = vpop.xlane.xlu0 %892
    %v894 = vsel %vm235, %v778, -inf
    %895 = vmax.xlane.f32.xlu0 %v894
    %v896 = vpop.xlane.xlu0 %895
    %v897 = vsel %vm235, %v804, -inf
    %898 = vmax.xlane.f32.xlu0 %v897
    %v899 = vpop.xlane.xlu0 %898
    %v900 = vsel %vm235, %v830, -inf
    %901 = vmax.xlane.f32.xlu0 %v900
    %v902 = vpop.xlane.xlu0 %901
    %v903 = vsel %vm235, %v856, -inf
    %904 = vmax.xlane.f32.xlu0 %v903
    %v905 = vpop.xlane.xlu0 %904
    %v906 = vsel %vm235, %v882, -inf
    %907 = vmax.xlane.f32.xlu0 %v906
    %v908 = vpop.xlane.xlu0 %907
    %v909 = vsub.f32 %v700, %v887
    %v910 = vsub.f32 %v726, %v890
    %v911 = vsub.f32 %v752, %v893
    %v912 = vsub.f32 %v778, %v896
    %v913 = vsub.f32 %v804, %v899
    %v914 = vsub.f32 %v830, %v902
    %v915 = vsub.f32 %v856, %v905
    %v916 = vsub.f32 %v882, %v908
    %v917 = vmul.f32 %v909, 1.442695
    %v918 = vpow.pop %v917
    %v919 = vmul.f32 %v910, 1.442695
    %v920 = vpow.pop %v919
    %v921 = vmul.f32 %v911, 1.442695
    %v922 = vpow.pop %v921
    %v923 = vmul.f32 %v912, 1.442695
    %v924 = vpow.pop %v923
    %v925 = vmul.f32 %v913, 1.442695
    %v926 = vpow.pop %v925
    %v927 = vmul.f32 %v914, 1.442695
    %v928 = vpow.pop %v927
    %v929 = vmul.f32 %v915, 1.442695
    %v930 = vpow.pop %v929
    %v931 = vmul.f32 %v916, 1.442695
    %v932 = vpow.pop %v931
    %v933 = vsel %vm235, %v918, 0.0
    %934 = vadd.xlane.f32.xlu0 %v933
    %v935 = vpop.xlane.xlu0 %934
    %v936 = vsel %vm235, %v920, 0.0
    %937 = vadd.xlane.f32.xlu0 %v936
    %v938 = vpop.xlane.xlu0 %937
    %v939 = vsel %vm235, %v922, 0.0
    %940 = vadd.xlane.f32.xlu0 %v939
    %v941 = vpop.xlane.xlu0 %940
    %v942 = vsel %vm235, %v924, 0.0
    %943 = vadd.xlane.f32.xlu0 %v942
    %v944 = vpop.xlane.xlu0 %943
    %v945 = vsel %vm235, %v926, 0.0
    %946 = vadd.xlane.f32.xlu0 %v945
    %v947 = vpop.xlane.xlu0 %946
    %v948 = vsel %vm235, %v928, 0.0
    %949 = vadd.xlane.f32.xlu0 %v948
    %v950 = vpop.xlane.xlu0 %949
    %v951 = vsel %vm235, %v930, 0.0
    %952 = vadd.xlane.f32.xlu0 %v951
    %v953 = vpop.xlane.xlu0 %952
    %v954 = vsel %vm235, %v932, 0.0
    %955 = vadd.xlane.f32.xlu0 %v954
    %v956 = vpop.xlane.xlu0 %955
    %v957 = vpack.c.bf16 %v918, %v918
    %v958 = vpack.c.bf16 %v920, %v920
    %v959 = vpack.c.bf16 %v922, %v922
    %v960 = vpack.c.bf16 %v924, %v924
    %v961 = vpack.c.bf16 %v926, %v926
    %v962 = vpack.c.bf16 %v928, %v928
    %v963 = vpack.c.bf16 %v930, %v930
    %v964 = vpack.c.bf16 %v932, %v932
    %965 = vrot.lane.b32.xlu0 %v470, 88
    %v966 = vpop.permute.xlu0 %965
    %v968 = vsel %vm235, %v957, 0
    %v971 = vsel %vm476, %v966, 0
    %973 = vmatpush.bf16.msra.mxu0 0
    %974 = vmatpush.bf16.msra.mxu0 0
    %975 = vmatpush.bf16.msra.mxu0 0
    %976 = vmatpush.bf16.msra.mxu0 0
    %977 = vmatpush.bf16.msra.mxu0 0
    %978 = vmatpush.bf16.msra.mxu0 0
    %979 = vmatpush.bf16.msra.mxu0 0
    %980 = vmatpush.bf16.msra.mxu0 %v971
    %981 = vmatmul.bf16.gmra.mxu0 %v968
    %v982 = vpop.f32.mrf.mxu0
    %v983 = vadd.f32 0.0, %v982
    %v984 = vpop.f32.mrf.mxu0
    %985 = vdwg.mxu0
    %986 = vrot.lane.b32.xlu0 %v495, 88
    %v987 = vpop.permute.xlu0 %986
    %v989 = vsel %vm235, %v958, 0
    %v992 = vsel %vm476, %v987, 0
    %994 = vmatpush.bf16.msra.mxu0 0
    %995 = vmatpush.bf16.msra.mxu0 0
    %996 = vmatpush.bf16.msra.mxu0 0
    %997 = vmatpush.bf16.msra.mxu0 0
    %998 = vmatpush.bf16.msra.mxu0 0
    %999 = vmatpush.bf16.msra.mxu0 0
    %1000 = vmatpush.bf16.msra.mxu0 0
    %1001 = vmatpush.bf16.msra.mxu0 %v992
    %1002 = vmatmul.bf16.gmra.mxu0 %v989
    %v1003 = vpop.f32.mrf.mxu0
    %v1004 = vadd.f32 0.0, %v1003
    %v1005 = vpop.f32.mrf.mxu0
    %1006 = vdwg.mxu0
    %1007 = vrot.lane.b32.xlu0 %v519, 88
    %v1008 = vpop.permute.xlu0 %1007
    %v1010 = vsel %vm235, %v959, 0
    %v1013 = vsel %vm476, %v1008, 0
    %1015 = vmatpush.bf16.msra.mxu0 0
    %1016 = vmatpush.bf16.msra.mxu0 0
    %1017 = vmatpush.bf16.msra.mxu0 0
    %1018 = vmatpush.bf16.msra.mxu0 0
    %1019 = vmatpush.bf16.msra.mxu0 0
    %1020 = vmatpush.bf16.msra.mxu0 0
    %1021 = vmatpush.bf16.msra.mxu0 0
    %1022 = vmatpush.bf16.msra.mxu0 %v1013
    %1023 = vmatmul.bf16.gmra.mxu0 %v1010
    %v1024 = vpop.f32.mrf.mxu0
    %v1025 = vadd.f32 0.0, %v1024
    %v1026 = vpop.f32.mrf.mxu0
    %1027 = vdwg.mxu0
    %1028 = vrot.lane.b32.xlu0 %v543, 88
    %v1029 = vpop.permute.xlu0 %1028
    %v1031 = vsel %vm235, %v960, 0
    %v1034 = vsel %vm476, %v1029, 0
    %1036 = vmatpush.bf16.msra.mxu0 0
    %1037 = vmatpush.bf16.msra.mxu0 0
    %1038 = vmatpush.bf16.msra.mxu0 0
    %1039 = vmatpush.bf16.msra.mxu0 0
    %1040 = vmatpush.bf16.msra.mxu0 0
    %1041 = vmatpush.bf16.msra.mxu0 0
    %1042 = vmatpush.bf16.msra.mxu0 0
    %1043 = vmatpush.bf16.msra.mxu0 %v1034
    %1044 = vmatmul.bf16.gmra.mxu0 %v1031
    %v1045 = vpop.f32.mrf.mxu0
    %v1046 = vadd.f32 0.0, %v1045
    %v1047 = vpop.f32.mrf.mxu0
    %1048 = vdwg.mxu0
    %1049 = vrot.lane.b32.xlu0 %v567, 88
    %v1050 = vpop.permute.xlu0 %1049
    %v1052 = vsel %vm235, %v961, 0
    %v1055 = vsel %vm476, %v1050, 0
    %1057 = vmatpush.bf16.msra.mxu0 0
    %1058 = vmatpush.bf16.msra.mxu0 0
    %1059 = vmatpush.bf16.msra.mxu0 0
    %1060 = vmatpush.bf16.msra.mxu0 0
    %1061 = vmatpush.bf16.msra.mxu0 0
    %1062 = vmatpush.bf16.msra.mxu0 0
    %1063 = vmatpush.bf16.msra.mxu0 0
    %1064 = vmatpush.bf16.msra.mxu0 %v1055
    %1065 = vmatmul.bf16.gmra.mxu0 %v1052
    %v1066 = vpop.f32.mrf.mxu0
    %v1067 = vadd.f32 0.0, %v1066
    %v1068 = vpop.f32.mrf.mxu0
    %1069 = vdwg.mxu0
    %1070 = vrot.lane.b32.xlu0 %v591, 88
    %v1071 = vpop.permute.xlu0 %1070
    %v1073 = vsel %vm235, %v962, 0
    %v1076 = vsel %vm476, %v1071, 0
    %1078 = vmatpush.bf16.msra.mxu0 0
    %1079 = vmatpush.bf16.msra.mxu0 0
    %1080 = vmatpush.bf16.msra.mxu0 0
    %1081 = vmatpush.bf16.msra.mxu0 0
    %1082 = vmatpush.bf16.msra.mxu0 0
    %1083 = vmatpush.bf16.msra.mxu0 0
    %1084 = vmatpush.bf16.msra.mxu0 0
    %1085 = vmatpush.bf16.msra.mxu0 %v1076
    %1086 = vmatmul.bf16.gmra.mxu0 %v1073
    %v1087 = vpop.f32.mrf.mxu0
    %v1088 = vadd.f32 0.0, %v1087
    %v1089 = vpop.f32.mrf.mxu0
    %1090 = vdwg.mxu0
    %1091 = vrot.lane.b32.xlu0 %v615, 88
    %v1092 = vpop.permute.xlu0 %1091
    %v1094 = vsel %vm235, %v963, 0
    %v1097 = vsel %vm476, %v1092, 0
    %1099 = vmatpush.bf16.msra.mxu0 0
    %1100 = vmatpush.bf16.msra.mxu0 0
    %1101 = vmatpush.bf16.msra.mxu0 0
    %1102 = vmatpush.bf16.msra.mxu0 0
    %1103 = vmatpush.bf16.msra.mxu0 0
    %1104 = vmatpush.bf16.msra.mxu0 0
    %1105 = vmatpush.bf16.msra.mxu0 0
    %1106 = vmatpush.bf16.msra.mxu0 %v1097
    %1107 = vmatmul.bf16.gmra.mxu0 %v1094
    %v1108 = vpop.f32.mrf.mxu0
    %v1109 = vadd.f32 0.0, %v1108
    %v1110 = vpop.f32.mrf.mxu0
    %1111 = vdwg.mxu0
    %1112 = vrot.lane.b32.xlu0 %v639, 88
    %v1113 = vpop.permute.xlu0 %1112
    %v1115 = vsel %vm235, %v964, 0
    %v1118 = vsel %vm476, %v1113, 0
    %1120 = vmatpush.bf16.msra.mxu0 0
    %1121 = vmatpush.bf16.msra.mxu0 0
    %1122 = vmatpush.bf16.msra.mxu0 0
    %1123 = vmatpush.bf16.msra.mxu0 0
    %1124 = vmatpush.bf16.msra.mxu0 0
    %1125 = vmatpush.bf16.msra.mxu0 0
    %1126 = vmatpush.bf16.msra.mxu0 0
    %1127 = vmatpush.bf16.msra.mxu0 %v1118
    %1128 = vmatmul.bf16.gmra.mxu0 %v1115
    %v1129 = vpop.f32.mrf.mxu0
    %v1130 = vadd.f32 0.0, %v1129
    %v1131 = vpop.f32.mrf.mxu0
    %1132 = vdwg.mxu0
    %v1133 = vrcp.pop %v935
    %v1134 = vrcp.pop %v938
    %v1135 = vrcp.pop %v941
    %v1136 = vrcp.pop %v944
    %v1137 = vrcp.pop %v947
    %v1138 = vrcp.pop %v950
    %v1139 = vrcp.pop %v953
    %v1140 = vrcp.pop %v956
    %v1141 = vmul.f32 %v983, %v1133
    %v1142 = vmul.f32 %v1004, %v1134
    %v1143 = vmul.f32 %v1025, %v1135
    %v1144 = vmul.f32 %v1046, %v1136
    %v1145 = vmul.f32 %v1067, %v1137
    %v1146 = vmul.f32 %v1088, %v1138
    %v1147 = vmul.f32 %v1109, %v1139
    %v1148 = vmul.f32 %v1130, %v1140
    %1149 = vrot.lane.b32.xlu0 %v679, 112
    %v1150 = vpop.permute.xlu0 %1149
    %1151 = vrot.lane.b32.xlu0 %v470, 112
    %v1152 = vpop.permute.xlu0 %1151
    %v1154 = vsel %vm235, %v1150, 0
    %v1157 = vsel %vm235, %v1152, 0
    %1159 = vmatpush.bf16.xpose.msra.mxu0 0
    %1160 = vmatpush.bf16.xpose.msra.mxu0 0
    %1161 = vmatpush.bf16.xpose.msra.mxu0 0
    %1162 = vmatpush.bf16.xpose.msra.mxu0 0
    %1163 = vmatpush.bf16.xpose.msra.mxu0 0
    %1164 = vmatpush.bf16.xpose.msra.mxu0 0
    %1165 = vmatpush.bf16.xpose.msra.mxu0 0
    %1166 = vmatpush.bf16.xpose.msra.mxu0 %v1157
    %1167 = vmatmul.bf16.gmra.mxu0 %v1154
    %v1168 = vpop.f32.mrf.mxu0
    %v1169 = vadd.f32 %v233, %v1168
    %v1170 = vpop.f32.mrf.mxu0
    %1171 = vdwg.mxu0
    %1172 = vrot.lane.b32.xlu0 %v705, 112
    %v1173 = vpop.permute.xlu0 %1172
    %1174 = vrot.lane.b32.xlu0 %v495, 112
    %v1175 = vpop.permute.xlu0 %1174
    %v1177 = vsel %vm235, %v1173, 0
    %v1180 = vsel %vm235, %v1175, 0
    %1182 = vmatpush.bf16.xpose.msra.mxu0 0
    %1183 = vmatpush.bf16.xpose.msra.mxu0 0
    %1184 = vmatpush.bf16.xpose.msra.mxu0 0
    %1185 = vmatpush.bf16.xpose.msra.mxu0 0
    %1186 = vmatpush.bf16.xpose.msra.mxu0 0
    %1187 = vmatpush.bf16.xpose.msra.mxu0 0
    %1188 = vmatpush.bf16.xpose.msra.mxu0 0
    %1189 = vmatpush.bf16.xpose.msra.mxu0 %v1180
    %1190 = vmatmul.bf16.gmra.mxu0 %v1177
    %v1191 = vpop.f32.mrf.mxu0
    %v1192 = vadd.f32 %v233, %v1191
    %v1193 = vpop.f32.mrf.mxu0
    %1194 = vdwg.mxu0
    %1195 = vrot.lane.b32.xlu0 %v731, 112
    %v1196 = vpop.permute.xlu0 %1195
    %1197 = vrot.lane.b32.xlu0 %v519, 112
    %v1198 = vpop.permute.xlu0 %1197
    %v1200 = vsel %vm235, %v1196, 0
    %v1203 = vsel %vm235, %v1198, 0
    %1205 = vmatpush.bf16.xpose.msra.mxu0 0
    %1206 = vmatpush.bf16.xpose.msra.mxu0 0
    %1207 = vmatpush.bf16.xpose.msra.mxu0 0
    %1208 = vmatpush.bf16.xpose.msra.mxu0 0
    %1209 = vmatpush.bf16.xpose.msra.mxu0 0
    %1210 = vmatpush.bf16.xpose.msra.mxu0 0
    %1211 = vmatpush.bf16.xpose.msra.mxu0 0
    %1212 = vmatpush.bf16.xpose.msra.mxu0 %v1203
    %1213 = vmatmul.bf16.gmra.mxu0 %v1200
    %v1214 = vpop.f32.mrf.mxu0
    %v1215 = vadd.f32 %v233, %v1214
    %v1216 = vpop.f32.mrf.mxu0
    %1217 = vdwg.mxu0
    %1218 = vrot.lane.b32.xlu0 %v757, 112
    %v1219 = vpop.permute.xlu0 %1218
    %1220 = vrot.lane.b32.xlu0 %v543, 112
    %v1221 = vpop.permute.xlu0 %1220
    %v1223 = vsel %vm235, %v1219, 0
    %v1226 = vsel %vm235, %v1221, 0
    %1228 = vmatpush.bf16.xpose.msra.mxu0 0
    %1229 = vmatpush.bf16.xpose.msra.mxu0 0
    %1230 = vmatpush.bf16.xpose.msra.mxu0 0
    %1231 = vmatpush.bf16.xpose.msra.mxu0 0
    %1232 = vmatpush.bf16.xpose.msra.mxu0 0
    %1233 = vmatpush.bf16.xpose.msra.mxu0 0
    %1234 = vmatpush.bf16.xpose.msra.mxu0 0
    %1235 = vmatpush.bf16.xpose.msra.mxu0 %v1226
    %1236 = vmatmul.bf16.gmra.mxu0 %v1223
    %v1237 = vpop.f32.mrf.mxu0
    %v1238 = vadd.f32 %v233, %v1237
    %v1239 = vpop.f32.mrf.mxu0
    %1240 = vdwg.mxu0
    %1241 = vrot.lane.b32.xlu0 %v783, 112
    %v1242 = vpop.permute.xlu0 %1241
    %1243 = vrot.lane.b32.xlu0 %v567, 112
    %v1244 = vpop.permute.xlu0 %1243
    %v1246 = vsel %vm235, %v1242, 0
    %v1249 = vsel %vm235, %v1244, 0
    %1251 = vmatpush.bf16.xpose.msra.mxu0 0
    %1252 = vmatpush.bf16.xpose.msra.mxu0 0
    %1253 = vmatpush.bf16.xpose.msra.mxu0 0
    %1254 = vmatpush.bf16.xpose.msra.mxu0 0
    %1255 = vmatpush.bf16.xpose.msra.mxu0 0
    %1256 = vmatpush.bf16.xpose.msra.mxu0 0
    %1257 = vmatpush.bf16.xpose.msra.mxu0 0
    %1258 = vmatpush.bf16.xpose.msra.mxu0 %v1249
    %1259 = vmatmul.bf16.gmra.mxu0 %v1246
    %v1260 = vpop.f32.mrf.mxu0
    %v1261 = vadd.f32 %v233, %v1260
    %v1262 = vpop.f32.mrf.mxu0
    %1263 = vdwg.mxu0
    %1264 = vrot.lane.b32.xlu0 %v809, 112
    %v1265 = vpop.permute.xlu0 %1264
    %1266 = vrot.lane.b32.xlu0 %v591, 112
    %v1267 = vpop.permute.xlu0 %1266
    %v1269 = vsel %vm235, %v1265, 0
    %v1272 = vsel %vm235, %v1267, 0
    %1274 = vmatpush.bf16.xpose.msra.mxu0 0
    %1275 = vmatpush.bf16.xpose.msra.mxu0 0
    %1276 = vmatpush.bf16.xpose.msra.mxu0 0
    %1277 = vmatpush.bf16.xpose.msra.mxu0 0
    %1278 = vmatpush.bf16.xpose.msra.mxu0 0
    %1279 = vmatpush.bf16.xpose.msra.mxu0 0
    %1280 = vmatpush.bf16.xpose.msra.mxu0 0
    %1281 = vmatpush.bf16.xpose.msra.mxu0 %v1272
    %1282 = vmatmul.bf16.gmra.mxu0 %v1269
    %v1283 = vpop.f32.mrf.mxu0
    %v1284 = vadd.f32 %v233, %v1283
    %v1285 = vpop.f32.mrf.mxu0
    %1286 = vdwg.mxu0
    %1287 = vrot.lane.b32.xlu0 %v835, 112
    %v1288 = vpop.permute.xlu0 %1287
    %1289 = vrot.lane.b32.xlu0 %v615, 112
    %v1290 = vpop.permute.xlu0 %1289
    %v1292 = vsel %vm235, %v1288, 0
    %v1295 = vsel %vm235, %v1290, 0
    %1297 = vmatpush.bf16.xpose.msra.mxu0 0
    %1298 = vmatpush.bf16.xpose.msra.mxu0 0
    %1299 = vmatpush.bf16.xpose.msra.mxu0 0
    %1300 = vmatpush.bf16.xpose.msra.mxu0 0
    %1301 = vmatpush.bf16.xpose.msra.mxu0 0
    %1302 = vmatpush.bf16.xpose.msra.mxu0 0
    %1303 = vmatpush.bf16.xpose.msra.mxu0 0
    %1304 = vmatpush.bf16.xpose.msra.mxu0 %v1295
    %1305 = vmatmul.bf16.gmra.mxu0 %v1292
    %v1306 = vpop.f32.mrf.mxu0
    %v1307 = vadd.f32 %v233, %v1306
    %v1308 = vpop.f32.mrf.mxu0
    %1309 = vdwg.mxu0
    %1310 = vrot.lane.b32.xlu0 %v861, 112
    %v1311 = vpop.permute.xlu0 %1310
    %1312 = vrot.lane.b32.xlu0 %v639, 112
    %v1313 = vpop.permute.xlu0 %1312
    %v1315 = vsel %vm235, %v1311, 0
    %v1318 = vsel %vm235, %v1313, 0
    %1320 = vmatpush.bf16.xpose.msra.mxu0 0
    %1321 = vmatpush.bf16.xpose.msra.mxu0 0
    %1322 = vmatpush.bf16.xpose.msra.mxu0 0
    %1323 = vmatpush.bf16.xpose.msra.mxu0 0
    %1324 = vmatpush.bf16.xpose.msra.mxu0 0
    %1325 = vmatpush.bf16.xpose.msra.mxu0 0
    %1326 = vmatpush.bf16.xpose.msra.mxu0 0
    %1327 = vmatpush.bf16.xpose.msra.mxu0 %v1318
    %1328 = vmatmul.bf16.gmra.mxu0 %v1315
    %v1329 = vpop.f32.mrf.mxu0
    %v1330 = vadd.f32 %v233, %v1329
    %v1331 = vpop.f32.mrf.mxu0
    %1332 = vdwg.mxu0
    %v1333 = vsel %vm235, %v1169, -inf
    %1334 = vmax.xlane.f32.xlu0 %v1333
    %v1335 = vpop.xlane.xlu0 %1334
    %v1336 = vsel %vm235, %v1192, -inf
    %1337 = vmax.xlane.f32.xlu0 %v1336
    %v1338 = vpop.xlane.xlu0 %1337
    %v1339 = vsel %vm235, %v1215, -inf
    %1340 = vmax.xlane.f32.xlu0 %v1339
    %v1341 = vpop.xlane.xlu0 %1340
    %v1342 = vsel %vm235, %v1238, -inf
    %1343 = vmax.xlane.f32.xlu0 %v1342
    %v1344 = vpop.xlane.xlu0 %1343
    %v1345 = vsel %vm235, %v1261, -inf
    %1346 = vmax.xlane.f32.xlu0 %v1345
    %v1347 = vpop.xlane.xlu0 %1346
    %v1348 = vsel %vm235, %v1284, -inf
    %1349 = vmax.xlane.f32.xlu0 %v1348
    %v1350 = vpop.xlane.xlu0 %1349
    %v1351 = vsel %vm235, %v1307, -inf
    %1352 = vmax.xlane.f32.xlu0 %v1351
    %v1353 = vpop.xlane.xlu0 %1352
    %v1354 = vsel %vm235, %v1330, -inf
    %1355 = vmax.xlane.f32.xlu0 %v1354
    %v1356 = vpop.xlane.xlu0 %1355
    %v1357 = vsub.f32 %v1169, %v1335
    %v1358 = vsub.f32 %v1192, %v1338
    %v1359 = vsub.f32 %v1215, %v1341
    %v1360 = vsub.f32 %v1238, %v1344
    %v1361 = vsub.f32 %v1261, %v1347
    %v1362 = vsub.f32 %v1284, %v1350
    %v1363 = vsub.f32 %v1307, %v1353
    %v1364 = vsub.f32 %v1330, %v1356
    %v1365 = vmul.f32 %v1357, 1.442695
    %v1366 = vpow.pop %v1365
    %v1367 = vmul.f32 %v1358, 1.442695
    %v1368 = vpow.pop %v1367
    %v1369 = vmul.f32 %v1359, 1.442695
    %v1370 = vpow.pop %v1369
    %v1371 = vmul.f32 %v1360, 1.442695
    %v1372 = vpow.pop %v1371
    %v1373 = vmul.f32 %v1361, 1.442695
    %v1374 = vpow.pop %v1373
    %v1375 = vmul.f32 %v1362, 1.442695
    %v1376 = vpow.pop %v1375
    %v1377 = vmul.f32 %v1363, 1.442695
    %v1378 = vpow.pop %v1377
    %v1379 = vmul.f32 %v1364, 1.442695
    %v1380 = vpow.pop %v1379
    %v1381 = vsel %vm235, %v1366, 0.0
    %1382 = vadd.xlane.f32.xlu0 %v1381
    %v1383 = vpop.xlane.xlu0 %1382
    %v1384 = vsel %vm235, %v1368, 0.0
    %1385 = vadd.xlane.f32.xlu0 %v1384
    %v1386 = vpop.xlane.xlu0 %1385
    %v1387 = vsel %vm235, %v1370, 0.0
    %1388 = vadd.xlane.f32.xlu0 %v1387
    %v1389 = vpop.xlane.xlu0 %1388
    %v1390 = vsel %vm235, %v1372, 0.0
    %1391 = vadd.xlane.f32.xlu0 %v1390
    %v1392 = vpop.xlane.xlu0 %1391
    %v1393 = vsel %vm235, %v1374, 0.0
    %1394 = vadd.xlane.f32.xlu0 %v1393
    %v1395 = vpop.xlane.xlu0 %1394
    %v1396 = vsel %vm235, %v1376, 0.0
    %1397 = vadd.xlane.f32.xlu0 %v1396
    %v1398 = vpop.xlane.xlu0 %1397
    %v1399 = vsel %vm235, %v1378, 0.0
    %1400 = vadd.xlane.f32.xlu0 %v1399
    %v1401 = vpop.xlane.xlu0 %1400
    %v1402 = vsel %vm235, %v1380, 0.0
    %1403 = vadd.xlane.f32.xlu0 %v1402
    %v1404 = vpop.xlane.xlu0 %1403
    %v1405 = vpack.c.bf16 %v1366, %v1366
    %v1406 = vpack.c.bf16 %v1368, %v1368
    %v1407 = vpack.c.bf16 %v1370, %v1370
    %v1408 = vpack.c.bf16 %v1372, %v1372
    %v1409 = vpack.c.bf16 %v1374, %v1374
    %v1410 = vpack.c.bf16 %v1376, %v1376
    %v1411 = vpack.c.bf16 %v1378, %v1378
    %v1412 = vpack.c.bf16 %v1380, %v1380
    %1413 = vrot.lane.b32.xlu0 %v470, 80
    %v1414 = vpop.permute.xlu0 %1413
    %v1416 = vsel %vm235, %v1405, 0
    %v1419 = vsel %vm476, %v1414, 0
    %1421 = vmatpush.bf16.msra.mxu0 0
    %1422 = vmatpush.bf16.msra.mxu0 0
    %1423 = vmatpush.bf16.msra.mxu0 0
    %1424 = vmatpush.bf16.msra.mxu0 0
    %1425 = vmatpush.bf16.msra.mxu0 0
    %1426 = vmatpush.bf16.msra.mxu0 0
    %1427 = vmatpush.bf16.msra.mxu0 0
    %1428 = vmatpush.bf16.msra.mxu0 %v1419
    %1429 = vmatmul.bf16.gmra.mxu0 %v1416
    %v1430 = vpop.f32.mrf.mxu0
    %v1431 = vadd.f32 0.0, %v1430
    %v1432 = vpop.f32.mrf.mxu0
    %1433 = vdwg.mxu0
    %1434 = vrot.lane.b32.xlu0 %v495, 80
    %v1435 = vpop.permute.xlu0 %1434
    %v1437 = vsel %vm235, %v1406, 0
    %v1440 = vsel %vm476, %v1435, 0
    %1442 = vmatpush.bf16.msra.mxu0 0
    %1443 = vmatpush.bf16.msra.mxu0 0
    %1444 = vmatpush.bf16.msra.mxu0 0
    %1445 = vmatpush.bf16.msra.mxu0 0
    %1446 = vmatpush.bf16.msra.mxu0 0
    %1447 = vmatpush.bf16.msra.mxu0 0
    %1448 = vmatpush.bf16.msra.mxu0 0
    %1449 = vmatpush.bf16.msra.mxu0 %v1440
    %1450 = vmatmul.bf16.gmra.mxu0 %v1437
    %v1451 = vpop.f32.mrf.mxu0
    %v1452 = vadd.f32 0.0, %v1451
    %v1453 = vpop.f32.mrf.mxu0
    %1454 = vdwg.mxu0
    %1455 = vrot.lane.b32.xlu0 %v519, 80
    %v1456 = vpop.permute.xlu0 %1455
    %v1458 = vsel %vm235, %v1407, 0
    %v1461 = vsel %vm476, %v1456, 0
    %1463 = vmatpush.bf16.msra.mxu0 0
    %1464 = vmatpush.bf16.msra.mxu0 0
    %1465 = vmatpush.bf16.msra.mxu0 0
    %1466 = vmatpush.bf16.msra.mxu0 0
    %1467 = vmatpush.bf16.msra.mxu0 0
    %1468 = vmatpush.bf16.msra.mxu0 0
    %1469 = vmatpush.bf16.msra.mxu0 0
    %1470 = vmatpush.bf16.msra.mxu0 %v1461
    %1471 = vmatmul.bf16.gmra.mxu0 %v1458
    %v1472 = vpop.f32.mrf.mxu0
    %v1473 = vadd.f32 0.0, %v1472
    %v1474 = vpop.f32.mrf.mxu0
    %1475 = vdwg.mxu0
    %1476 = vrot.lane.b32.xlu0 %v543, 80
    %v1477 = vpop.permute.xlu0 %1476
    %v1479 = vsel %vm235, %v1408, 0
    %v1482 = vsel %vm476, %v1477, 0
    %1484 = vmatpush.bf16.msra.mxu0 0
    %1485 = vmatpush.bf16.msra.mxu0 0
    %1486 = vmatpush.bf16.msra.mxu0 0
    %1487 = vmatpush.bf16.msra.mxu0 0
    %1488 = vmatpush.bf16.msra.mxu0 0
    %1489 = vmatpush.bf16.msra.mxu0 0
    %1490 = vmatpush.bf16.msra.mxu0 0
    %1491 = vmatpush.bf16.msra.mxu0 %v1482
    %1492 = vmatmul.bf16.gmra.mxu0 %v1479
    %v1493 = vpop.f32.mrf.mxu0
    %v1494 = vadd.f32 0.0, %v1493
    %v1495 = vpop.f32.mrf.mxu0
    %1496 = vdwg.mxu0
    %1497 = vrot.lane.b32.xlu0 %v567, 80
    %v1498 = vpop.permute.xlu0 %1497
    %v1500 = vsel %vm235, %v1409, 0
    %v1503 = vsel %vm476, %v1498, 0
    %1505 = vmatpush.bf16.msra.mxu0 0
    %1506 = vmatpush.bf16.msra.mxu0 0
    %1507 = vmatpush.bf16.msra.mxu0 0
    %1508 = vmatpush.bf16.msra.mxu0 0
    %1509 = vmatpush.bf16.msra.mxu0 0
    %1510 = vmatpush.bf16.msra.mxu0 0
    %1511 = vmatpush.bf16.msra.mxu0 0
    %1512 = vmatpush.bf16.msra.mxu0 %v1503
    %1513 = vmatmul.bf16.gmra.mxu0 %v1500
    %v1514 = vpop.f32.mrf.mxu0
    %v1515 = vadd.f32 0.0, %v1514
    %v1516 = vpop.f32.mrf.mxu0
    %1517 = vdwg.mxu0
    %1518 = vrot.lane.b32.xlu0 %v591, 80
    %v1519 = vpop.permute.xlu0 %1518
    %v1521 = vsel %vm235, %v1410, 0
    %v1524 = vsel %vm476, %v1519, 0
    %1526 = vmatpush.bf16.msra.mxu0 0
    %1527 = vmatpush.bf16.msra.mxu0 0
    %1528 = vmatpush.bf16.msra.mxu0 0
    %1529 = vmatpush.bf16.msra.mxu0 0
    %1530 = vmatpush.bf16.msra.mxu0 0
    %1531 = vmatpush.bf16.msra.mxu0 0
    %1532 = vmatpush.bf16.msra.mxu0 0
    %1533 = vmatpush.bf16.msra.mxu0 %v1524
    %1534 = vmatmul.bf16.gmra.mxu0 %v1521
    %v1535 = vpop.f32.mrf.mxu0
    %v1536 = vadd.f32 0.0, %v1535
    %v1537 = vpop.f32.mrf.mxu0
    %1538 = vdwg.mxu0
    %1539 = vrot.lane.b32.xlu0 %v615, 80
    %v1540 = vpop.permute.xlu0 %1539
    %v1542 = vsel %vm235, %v1411, 0
    %v1545 = vsel %vm476, %v1540, 0
    %1547 = vmatpush.bf16.msra.mxu0 0
    %1548 = vmatpush.bf16.msra.mxu0 0
    %1549 = vmatpush.bf16.msra.mxu0 0
    %1550 = vmatpush.bf16.msra.mxu0 0
    %1551 = vmatpush.bf16.msra.mxu0 0
    %1552 = vmatpush.bf16.msra.mxu0 0
    %1553 = vmatpush.bf16.msra.mxu0 0
    %1554 = vmatpush.bf16.msra.mxu0 %v1545
    %1555 = vmatmul.bf16.gmra.mxu0 %v1542
    %v1556 = vpop.f32.mrf.mxu0
    %v1557 = vadd.f32 0.0, %v1556
    %v1558 = vpop.f32.mrf.mxu0
    %1559 = vdwg.mxu0
    %1560 = vrot.lane.b32.xlu0 %v639, 80
    %v1561 = vpop.permute.xlu0 %1560
    %v1563 = vsel %vm235, %v1412, 0
    %v1566 = vsel %vm476, %v1561, 0
    %1568 = vmatpush.bf16.msra.mxu0 0
    %1569 = vmatpush.bf16.msra.mxu0 0
    %1570 = vmatpush.bf16.msra.mxu0 0
    %1571 = vmatpush.bf16.msra.mxu0 0
    %1572 = vmatpush.bf16.msra.mxu0 0
    %1573 = vmatpush.bf16.msra.mxu0 0
    %1574 = vmatpush.bf16.msra.mxu0 0
    %1575 = vmatpush.bf16.msra.mxu0 %v1566
    %1576 = vmatmul.bf16.gmra.mxu0 %v1563
    %v1577 = vpop.f32.mrf.mxu0
    %v1578 = vadd.f32 0.0, %v1577
    %v1579 = vpop.f32.mrf.mxu0
    %1580 = vdwg.mxu0
    %v1581 = vrcp.pop %v1383
    %v1582 = vrcp.pop %v1386
    %v1583 = vrcp.pop %v1389
    %v1584 = vrcp.pop %v1392
    %v1585 = vrcp.pop %v1395
    %v1586 = vrcp.pop %v1398
    %v1587 = vrcp.pop %v1401
    %v1588 = vrcp.pop %v1404
    %v1589 = vmul.f32 %v1431, %v1581
    %v1590 = vmul.f32 %v1452, %v1582
    %v1591 = vmul.f32 %v1473, %v1583
    %v1592 = vmul.f32 %v1494, %v1584
    %v1593 = vmul.f32 %v1515, %v1585
    %v1594 = vmul.f32 %v1536, %v1586
    %v1595 = vmul.f32 %v1557, %v1587
    %v1596 = vmul.f32 %v1578, %v1588
    %1597 = vrot.lane.b32.xlu0 %v679, 104
    %v1598 = vpop.permute.xlu0 %1597
    %1599 = vrot.lane.b32.xlu0 %v470, 104
    %v1600 = vpop.permute.xlu0 %1599
    %v1602 = vsel %vm235, %v1598, 0
    %v1605 = vsel %vm235, %v1600, 0
    %1607 = vmatpush.bf16.xpose.msra.mxu0 0
    %1608 = vmatpush.bf16.xpose.msra.mxu0 0
    %1609 = vmatpush.bf16.xpose.msra.mxu0 0
    %1610 = vmatpush.bf16.xpose.msra.mxu0 0
    %1611 = vmatpush.bf16.xpose.msra.mxu0 0
    %1612 = vmatpush.bf16.xpose.msra.mxu0 0
    %1613 = vmatpush.bf16.xpose.msra.mxu0 0
    %1614 = vmatpush.bf16.xpose.msra.mxu0 %v1605
    %1615 = vmatmul.bf16.gmra.mxu0 %v1602
    %v1616 = vpop.f32.mrf.mxu0
    %v1617 = vadd.f32 %v234, %v1616
    %v1618 = vpop.f32.mrf.mxu0
    %1619 = vdwg.mxu0
    %1620 = vrot.lane.b32.xlu0 %v705, 104
    %v1621 = vpop.permute.xlu0 %1620
    %1622 = vrot.lane.b32.xlu0 %v495, 104
    %v1623 = vpop.permute.xlu0 %1622
    %v1625 = vsel %vm235, %v1621, 0
    %v1628 = vsel %vm235, %v1623, 0
    %1630 = vmatpush.bf16.xpose.msra.mxu0 0
    %1631 = vmatpush.bf16.xpose.msra.mxu0 0
    %1632 = vmatpush.bf16.xpose.msra.mxu0 0
    %1633 = vmatpush.bf16.xpose.msra.mxu0 0
    %1634 = vmatpush.bf16.xpose.msra.mxu0 0
    %1635 = vmatpush.bf16.xpose.msra.mxu0 0
    %1636 = vmatpush.bf16.xpose.msra.mxu0 0
    %1637 = vmatpush.bf16.xpose.msra.mxu0 %v1628
    %1638 = vmatmul.bf16.gmra.mxu0 %v1625
    %v1639 = vpop.f32.mrf.mxu0
    %v1640 = vadd.f32 %v234, %v1639
    %v1641 = vpop.f32.mrf.mxu0
    %1642 = vdwg.mxu0
    %1643 = vrot.lane.b32.xlu0 %v731, 104
    %v1644 = vpop.permute.xlu0 %1643
    %1645 = vrot.lane.b32.xlu0 %v519, 104
    %v1646 = vpop.permute.xlu0 %1645
    %v1648 = vsel %vm235, %v1644, 0
    %v1651 = vsel %vm235, %v1646, 0
    %1653 = vmatpush.bf16.xpose.msra.mxu0 0
    %1654 = vmatpush.bf16.xpose.msra.mxu0 0
    %1655 = vmatpush.bf16.xpose.msra.mxu0 0
    %1656 = vmatpush.bf16.xpose.msra.mxu0 0
    %1657 = vmatpush.bf16.xpose.msra.mxu0 0
    %1658 = vmatpush.bf16.xpose.msra.mxu0 0
    %1659 = vmatpush.bf16.xpose.msra.mxu0 0
    %1660 = vmatpush.bf16.xpose.msra.mxu0 %v1651
    %1661 = vmatmul.bf16.gmra.mxu0 %v1648
    %v1662 = vpop.f32.mrf.mxu0
    %v1663 = vadd.f32 %v234, %v1662
    %v1664 = vpop.f32.mrf.mxu0
    %1665 = vdwg.mxu0
    %1666 = vrot.lane.b32.xlu0 %v757, 104
    %v1667 = vpop.permute.xlu0 %1666
    %1668 = vrot.lane.b32.xlu0 %v543, 104
    %v1669 = vpop.permute.xlu0 %1668
    %v1671 = vsel %vm235, %v1667, 0
    %v1674 = vsel %vm235, %v1669, 0
    %1676 = vmatpush.bf16.xpose.msra.mxu0 0
    %1677 = vmatpush.bf16.xpose.msra.mxu0 0
    %1678 = vmatpush.bf16.xpose.msra.mxu0 0
    %1679 = vmatpush.bf16.xpose.msra.mxu0 0
    %1680 = vmatpush.bf16.xpose.msra.mxu0 0
    %1681 = vmatpush.bf16.xpose.msra.mxu0 0
    %1682 = vmatpush.bf16.xpose.msra.mxu0 0
    %1683 = vmatpush.bf16.xpose.msra.mxu0 %v1674
    %1684 = vmatmul.bf16.gmra.mxu0 %v1671
    %v1685 = vpop.f32.mrf.mxu0
    %v1686 = vadd.f32 %v234, %v1685
    %v1687 = vpop.f32.mrf.mxu0
    %1688 = vdwg.mxu0
    %1689 = vrot.lane.b32.xlu0 %v783, 104
    %v1690 = vpop.permute.xlu0 %1689
    %1691 = vrot.lane.b32.xlu0 %v567, 104
    %v1692 = vpop.permute.xlu0 %1691
    %v1694 = vsel %vm235, %v1690, 0
    %v1697 = vsel %vm235, %v1692, 0
    %1699 = vmatpush.bf16.xpose.msra.mxu0 0
    %1700 = vmatpush.bf16.xpose.msra.mxu0 0
    %1701 = vmatpush.bf16.xpose.msra.mxu0 0
    %1702 = vmatpush.bf16.xpose.msra.mxu0 0
    %1703 = vmatpush.bf16.xpose.msra.mxu0 0
    %1704 = vmatpush.bf16.xpose.msra.mxu0 0
    %1705 = vmatpush.bf16.xpose.msra.mxu0 0
    %1706 = vmatpush.bf16.xpose.msra.mxu0 %v1697
    %1707 = vmatmul.bf16.gmra.mxu0 %v1694
    %v1708 = vpop.f32.mrf.mxu0
    %v1709 = vadd.f32 %v234, %v1708
    %v1710 = vpop.f32.mrf.mxu0
    %1711 = vdwg.mxu0
    %1712 = vrot.lane.b32.xlu0 %v809, 104
    %v1713 = vpop.permute.xlu0 %1712
    %1714 = vrot.lane.b32.xlu0 %v591, 104
    %v1715 = vpop.permute.xlu0 %1714
    %v1717 = vsel %vm235, %v1713, 0
    %v1720 = vsel %vm235, %v1715, 0
    %1722 = vmatpush.bf16.xpose.msra.mxu0 0
    %1723 = vmatpush.bf16.xpose.msra.mxu0 0
    %1724 = vmatpush.bf16.xpose.msra.mxu0 0
    %1725 = vmatpush.bf16.xpose.msra.mxu0 0
    %1726 = vmatpush.bf16.xpose.msra.mxu0 0
    %1727 = vmatpush.bf16.xpose.msra.mxu0 0
    %1728 = vmatpush.bf16.xpose.msra.mxu0 0
    %1729 = vmatpush.bf16.xpose.msra.mxu0 %v1720
    %1730 = vmatmul.bf16.gmra.mxu0 %v1717
    %v1731 = vpop.f32.mrf.mxu0
    %v1732 = vadd.f32 %v234, %v1731
    %v1733 = vpop.f32.mrf.mxu0
    %1734 = vdwg.mxu0
    %1735 = vrot.lane.b32.xlu0 %v835, 104
    %v1736 = vpop.permute.xlu0 %1735
    %1737 = vrot.lane.b32.xlu0 %v615, 104
    %v1738 = vpop.permute.xlu0 %1737
    %v1740 = vsel %vm235, %v1736, 0
    %v1743 = vsel %vm235, %v1738, 0
    %1745 = vmatpush.bf16.xpose.msra.mxu0 0
    %1746 = vmatpush.bf16.xpose.msra.mxu0 0
    %1747 = vmatpush.bf16.xpose.msra.mxu0 0
    %1748 = vmatpush.bf16.xpose.msra.mxu0 0
    %1749 = vmatpush.bf16.xpose.msra.mxu0 0
    %1750 = vmatpush.bf16.xpose.msra.mxu0 0
    %1751 = vmatpush.bf16.xpose.msra.mxu0 0
    %1752 = vmatpush.bf16.xpose.msra.mxu0 %v1743
    %1753 = vmatmul.bf16.gmra.mxu0 %v1740
    %v1754 = vpop.f32.mrf.mxu0
    %v1755 = vadd.f32 %v234, %v1754
    %v1756 = vpop.f32.mrf.mxu0
    %1757 = vdwg.mxu0
    %1758 = vrot.lane.b32.xlu0 %v861, 104
    %v1759 = vpop.permute.xlu0 %1758
    %1760 = vrot.lane.b32.xlu0 %v639, 104
    %v1761 = vpop.permute.xlu0 %1760
    %v1763 = vsel %vm235, %v1759, 0
    %v1766 = vsel %vm235, %v1761, 0
    %1768 = vmatpush.bf16.xpose.msra.mxu0 0
    %1769 = vmatpush.bf16.xpose.msra.mxu0 0
    %1770 = vmatpush.bf16.xpose.msra.mxu0 0
    %1771 = vmatpush.bf16.xpose.msra.mxu0 0
    %1772 = vmatpush.bf16.xpose.msra.mxu0 0
    %1773 = vmatpush.bf16.xpose.msra.mxu0 0
    %1774 = vmatpush.bf16.xpose.msra.mxu0 0
    %1775 = vmatpush.bf16.xpose.msra.mxu0 %v1766
    %1776 = vmatmul.bf16.gmra.mxu0 %v1763
    %v1777 = vpop.f32.mrf.mxu0
    %v1778 = vadd.f32 %v234, %v1777
    %v1779 = vpop.f32.mrf.mxu0
    %1780 = vdwg.mxu0
    %v1781 = vsel %vm235, %v1617, -inf
    %1782 = vmax.xlane.f32.xlu0 %v1781
    %v1783 = vpop.xlane.xlu0 %1782
    %v1784 = vsel %vm235, %v1640, -inf
    %1785 = vmax.xlane.f32.xlu0 %v1784
    %v1786 = vpop.xlane.xlu0 %1785
    %v1787 = vsel %vm235, %v1663, -inf
    %1788 = vmax.xlane.f32.xlu0 %v1787
    %v1789 = vpop.xlane.xlu0 %1788
    %v1790 = vsel %vm235, %v1686, -inf
    %1791 = vmax.xlane.f32.xlu0 %v1790
    %v1792 = vpop.xlane.xlu0 %1791
    %v1793 = vsel %vm235, %v1709, -inf
    %1794 = vmax.xlane.f32.xlu0 %v1793
    %v1795 = vpop.xlane.xlu0 %1794
    %v1796 = vsel %vm235, %v1732, -inf
    %1797 = vmax.xlane.f32.xlu0 %v1796
    %v1798 = vpop.xlane.xlu0 %1797
    %v1799 = vsel %vm235, %v1755, -inf
    %1800 = vmax.xlane.f32.xlu0 %v1799
    %v1801 = vpop.xlane.xlu0 %1800
    %v1802 = vsel %vm235, %v1778, -inf
    %1803 = vmax.xlane.f32.xlu0 %v1802
    %v1804 = vpop.xlane.xlu0 %1803
    %v1805 = vsub.f32 %v1617, %v1783
    %v1806 = vsub.f32 %v1640, %v1786
    %v1807 = vsub.f32 %v1663, %v1789
    %v1808 = vsub.f32 %v1686, %v1792
    %v1809 = vsub.f32 %v1709, %v1795
    %v1810 = vsub.f32 %v1732, %v1798
    %v1811 = vsub.f32 %v1755, %v1801
    %v1812 = vsub.f32 %v1778, %v1804
    %v1813 = vmul.f32 %v1805, 1.442695
    %v1814 = vpow.pop %v1813
    %v1815 = vmul.f32 %v1806, 1.442695
    %v1816 = vpow.pop %v1815
    %v1817 = vmul.f32 %v1807, 1.442695
    %v1818 = vpow.pop %v1817
    %v1819 = vmul.f32 %v1808, 1.442695
    %v1820 = vpow.pop %v1819
    %v1821 = vmul.f32 %v1809, 1.442695
    %v1822 = vpow.pop %v1821
    %v1823 = vmul.f32 %v1810, 1.442695
    %v1824 = vpow.pop %v1823
    %v1825 = vmul.f32 %v1811, 1.442695
    %v1826 = vpow.pop %v1825
    %v1827 = vmul.f32 %v1812, 1.442695
    %v1828 = vpow.pop %v1827
    %v1829 = vsel %vm235, %v1814, 0.0
    %1830 = vadd.xlane.f32.xlu0 %v1829
    %v1831 = vpop.xlane.xlu0 %1830
    %v1832 = vsel %vm235, %v1816, 0.0
    %1833 = vadd.xlane.f32.xlu0 %v1832
    %v1834 = vpop.xlane.xlu0 %1833
    %v1835 = vsel %vm235, %v1818, 0.0
    %1836 = vadd.xlane.f32.xlu0 %v1835
    %v1837 = vpop.xlane.xlu0 %1836
    %v1838 = vsel %vm235, %v1820, 0.0
    %1839 = vadd.xlane.f32.xlu0 %v1838
    %v1840 = vpop.xlane.xlu0 %1839
    %v1841 = vsel %vm235, %v1822, 0.0
    %1842 = vadd.xlane.f32.xlu0 %v1841
    %v1843 = vpop.xlane.xlu0 %1842
    %v1844 = vsel %vm235, %v1824, 0.0
    %1845 = vadd.xlane.f32.xlu0 %v1844
    %v1846 = vpop.xlane.xlu0 %1845
    %v1847 = vsel %vm235, %v1826, 0.0
    %1848 = vadd.xlane.f32.xlu0 %v1847
    %v1849 = vpop.xlane.xlu0 %1848
    %v1850 = vsel %vm235, %v1828, 0.0
    %1851 = vadd.xlane.f32.xlu0 %v1850
    %v1852 = vpop.xlane.xlu0 %1851
    %v1853 = vpack.c.bf16 %v1814, %v1814
    %v1854 = vpack.c.bf16 %v1816, %v1816
    %v1855 = vpack.c.bf16 %v1818, %v1818
    %v1856 = vpack.c.bf16 %v1820, %v1820
    %v1857 = vpack.c.bf16 %v1822, %v1822
    %v1858 = vpack.c.bf16 %v1824, %v1824
    %v1859 = vpack.c.bf16 %v1826, %v1826
    %v1860 = vpack.c.bf16 %v1828, %v1828
    %1861 = vrot.lane.b32.xlu0 %v470, 72
    %v1862 = vpop.permute.xlu0 %1861
    %v1864 = vsel %vm235, %v1853, 0
    %v1867 = vsel %vm476, %v1862, 0
    %1869 = vmatpush.bf16.msra.mxu0 0
    %1870 = vmatpush.bf16.msra.mxu0 0
    %1871 = vmatpush.bf16.msra.mxu0 0
    %1872 = vmatpush.bf16.msra.mxu0 0
    %1873 = vmatpush.bf16.msra.mxu0 0
    %1874 = vmatpush.bf16.msra.mxu0 0
    %1875 = vmatpush.bf16.msra.mxu0 0
    %1876 = vmatpush.bf16.msra.mxu0 %v1867
    %1877 = vmatmul.bf16.gmra.mxu0 %v1864
    %v1878 = vpop.f32.mrf.mxu0
    %v1879 = vadd.f32 0.0, %v1878
    %v1880 = vpop.f32.mrf.mxu0
    %1881 = vdwg.mxu0
    %1882 = vrot.lane.b32.xlu0 %v495, 72
    %v1883 = vpop.permute.xlu0 %1882
    %v1885 = vsel %vm235, %v1854, 0
    %v1888 = vsel %vm476, %v1883, 0
    %1890 = vmatpush.bf16.msra.mxu0 0
    %1891 = vmatpush.bf16.msra.mxu0 0
    %1892 = vmatpush.bf16.msra.mxu0 0
    %1893 = vmatpush.bf16.msra.mxu0 0
    %1894 = vmatpush.bf16.msra.mxu0 0
    %1895 = vmatpush.bf16.msra.mxu0 0
    %1896 = vmatpush.bf16.msra.mxu0 0
    %1897 = vmatpush.bf16.msra.mxu0 %v1888
    %1898 = vmatmul.bf16.gmra.mxu0 %v1885
    %v1899 = vpop.f32.mrf.mxu0
    %v1900 = vadd.f32 0.0, %v1899
    %v1901 = vpop.f32.mrf.mxu0
    %1902 = vdwg.mxu0
    %1903 = vrot.lane.b32.xlu0 %v519, 72
    %v1904 = vpop.permute.xlu0 %1903
    %v1906 = vsel %vm235, %v1855, 0
    %v1909 = vsel %vm476, %v1904, 0
    %1911 = vmatpush.bf16.msra.mxu0 0
    %1912 = vmatpush.bf16.msra.mxu0 0
    %1913 = vmatpush.bf16.msra.mxu0 0
    %1914 = vmatpush.bf16.msra.mxu0 0
    %1915 = vmatpush.bf16.msra.mxu0 0
    %1916 = vmatpush.bf16.msra.mxu0 0
    %1917 = vmatpush.bf16.msra.mxu0 0
    %1918 = vmatpush.bf16.msra.mxu0 %v1909
    %1919 = vmatmul.bf16.gmra.mxu0 %v1906
    %v1920 = vpop.f32.mrf.mxu0
    %v1921 = vadd.f32 0.0, %v1920
    %v1922 = vpop.f32.mrf.mxu0
    %1923 = vdwg.mxu0
    %1924 = vrot.lane.b32.xlu0 %v543, 72
    %v1925 = vpop.permute.xlu0 %1924
    %v1927 = vsel %vm235, %v1856, 0
    %v1930 = vsel %vm476, %v1925, 0
    %1932 = vmatpush.bf16.msra.mxu0 0
    %1933 = vmatpush.bf16.msra.mxu0 0
    %1934 = vmatpush.bf16.msra.mxu0 0
    %1935 = vmatpush.bf16.msra.mxu0 0
    %1936 = vmatpush.bf16.msra.mxu0 0
    %1937 = vmatpush.bf16.msra.mxu0 0
    %1938 = vmatpush.bf16.msra.mxu0 0
    %1939 = vmatpush.bf16.msra.mxu0 %v1930
    %1940 = vmatmul.bf16.gmra.mxu0 %v1927
    %v1941 = vpop.f32.mrf.mxu0
    %v1942 = vadd.f32 0.0, %v1941
    %v1943 = vpop.f32.mrf.mxu0
    %1944 = vdwg.mxu0
    %1945 = vrot.lane.b32.xlu0 %v567, 72
    %v1946 = vpop.permute.xlu0 %1945
    %v1948 = vsel %vm235, %v1857, 0
    %v1951 = vsel %vm476, %v1946, 0
    %1953 = vmatpush.bf16.msra.mxu0 0
    %1954 = vmatpush.bf16.msra.mxu0 0
    %1955 = vmatpush.bf16.msra.mxu0 0
    %1956 = vmatpush.bf16.msra.mxu0 0
    %1957 = vmatpush.bf16.msra.mxu0 0
    %1958 = vmatpush.bf16.msra.mxu0 0
    %1959 = vmatpush.bf16.msra.mxu0 0
    %1960 = vmatpush.bf16.msra.mxu0 %v1951
    %1961 = vmatmul.bf16.gmra.mxu0 %v1948
    %v1962 = vpop.f32.mrf.mxu0
    %v1963 = vadd.f32 0.0, %v1962
    %v1964 = vpop.f32.mrf.mxu0
    %1965 = vdwg.mxu0
    %1966 = vrot.lane.b32.xlu0 %v591, 72
    %v1967 = vpop.permute.xlu0 %1966
    %v1969 = vsel %vm235, %v1858, 0
    %v1972 = vsel %vm476, %v1967, 0
    %1974 = vmatpush.bf16.msra.mxu0 0
    %1975 = vmatpush.bf16.msra.mxu0 0
    %1976 = vmatpush.bf16.msra.mxu0 0
    %1977 = vmatpush.bf16.msra.mxu0 0
    %1978 = vmatpush.bf16.msra.mxu0 0
    %1979 = vmatpush.bf16.msra.mxu0 0
    %1980 = vmatpush.bf16.msra.mxu0 0
    %1981 = vmatpush.bf16.msra.mxu0 %v1972
    %1982 = vmatmul.bf16.gmra.mxu0 %v1969
    %v1983 = vpop.f32.mrf.mxu0
    %v1984 = vadd.f32 0.0, %v1983
    %v1985 = vpop.f32.mrf.mxu0
    %1986 = vdwg.mxu0
    %1987 = vrot.lane.b32.xlu0 %v615, 72
    %v1988 = vpop.permute.xlu0 %1987
    %v1990 = vsel %vm235, %v1859, 0
    %v1993 = vsel %vm476, %v1988, 0
    %1995 = vmatpush.bf16.msra.mxu0 0
    %1996 = vmatpush.bf16.msra.mxu0 0
    %1997 = vmatpush.bf16.msra.mxu0 0
    %1998 = vmatpush.bf16.msra.mxu0 0
    %1999 = vmatpush.bf16.msra.mxu0 0
    %2000 = vmatpush.bf16.msra.mxu0 0
    %2001 = vmatpush.bf16.msra.mxu0 0
    %2002 = vmatpush.bf16.msra.mxu0 %v1993
    %2003 = vmatmul.bf16.gmra.mxu0 %v1990
    %v2004 = vpop.f32.mrf.mxu0
    %v2005 = vadd.f32 0.0, %v2004
    %v2006 = vpop.f32.mrf.mxu0
    %2007 = vdwg.mxu0
    %2008 = vrot.lane.b32.xlu0 %v639, 72
    %v2009 = vpop.permute.xlu0 %2008
    %v2011 = vsel %vm235, %v1860, 0
    %v2014 = vsel %vm476, %v2009, 0
    %2016 = vmatpush.bf16.msra.mxu0 0
    %2017 = vmatpush.bf16.msra.mxu0 0
    %2018 = vmatpush.bf16.msra.mxu0 0
    %2019 = vmatpush.bf16.msra.mxu0 0
    %2020 = vmatpush.bf16.msra.mxu0 0
    %2021 = vmatpush.bf16.msra.mxu0 0
    %2022 = vmatpush.bf16.msra.mxu0 0
    %2023 = vmatpush.bf16.msra.mxu0 %v2014
    %2024 = vmatmul.bf16.gmra.mxu0 %v2011
    %v2025 = vpop.f32.mrf.mxu0
    %v2026 = vadd.f32 0.0, %v2025
    %v2027 = vpop.f32.mrf.mxu0
    %2028 = vdwg.mxu0
    %v2029 = vrcp.pop %v1831
    %v2030 = vrcp.pop %v1834
    %v2031 = vrcp.pop %v1837
    %v2032 = vrcp.pop %v1840
    %v2033 = vrcp.pop %v1843
    %v2034 = vrcp.pop %v1846
    %v2035 = vrcp.pop %v1849
    %v2036 = vrcp.pop %v1852
    %v2037 = vmul.f32 %v1879, %v2029
    %v2038 = vmul.f32 %v1900, %v2030
    %v2039 = vmul.f32 %v1921, %v2031
    %v2040 = vmul.f32 %v1942, %v2032
    %v2041 = vmul.f32 %v1963, %v2033
    %v2042 = vmul.f32 %v1984, %v2034
    %v2043 = vmul.f32 %v2005, %v2035
    %v2044 = vmul.f32 %v2026, %v2036
    %2053 = vrot.lane.b32.xlu0 %v1141, 8
    %v2054 = vpop.permute.xlu0 %2053
    %2055 = vrot.lane.b32.xlu0 %v1142, 8
    %v2056 = vpop.permute.xlu0 %2055
    %2057 = vrot.lane.b32.xlu0 %v1143, 8
    %v2058 = vpop.permute.xlu0 %2057
    %2059 = vrot.lane.b32.xlu0 %v1144, 8
    %v2060 = vpop.permute.xlu0 %2059
    %2061 = vrot.lane.b32.xlu0 %v1145, 8
    %v2062 = vpop.permute.xlu0 %2061
    %2063 = vrot.lane.b32.xlu0 %v1146, 8
    %v2064 = vpop.permute.xlu0 %2063
    %2065 = vrot.lane.b32.xlu0 %v1147, 8
    %v2066 = vpop.permute.xlu0 %2065
    %2067 = vrot.lane.b32.xlu0 %v1148, 8
    %v2068 = vpop.permute.xlu0 %2067
    %2085 = vrot.lane.b32.xlu0 %v1589, 16
    %v2086 = vpop.permute.xlu0 %2085
    %2087 = vrot.lane.b32.xlu0 %v1590, 16
    %v2088 = vpop.permute.xlu0 %2087
    %2089 = vrot.lane.b32.xlu0 %v1591, 16
    %v2090 = vpop.permute.xlu0 %2089
    %2091 = vrot.lane.b32.xlu0 %v1592, 16
    %v2092 = vpop.permute.xlu0 %2091
    %2093 = vrot.lane.b32.xlu0 %v1593, 16
    %v2094 = vpop.permute.xlu0 %2093
    %2095 = vrot.lane.b32.xlu0 %v1594, 16
    %v2096 = vpop.permute.xlu0 %2095
    %2097 = vrot.lane.b32.xlu0 %v1595, 16
    %v2098 = vpop.permute.xlu0 %2097
    %2099 = vrot.lane.b32.xlu0 %v1596, 16
    %v2100 = vpop.permute.xlu0 %2099
    %2117 = vrot.lane.b32.xlu0 %v2037, 24
    %v2118 = vpop.permute.xlu0 %2117
    %2119 = vrot.lane.b32.xlu0 %v2038, 24
    %v2120 = vpop.permute.xlu0 %2119
    %2121 = vrot.lane.b32.xlu0 %v2039, 24
    %v2122 = vpop.permute.xlu0 %2121
    %2123 = vrot.lane.b32.xlu0 %v2040, 24
    %v2124 = vpop.permute.xlu0 %2123
    %2125 = vrot.lane.b32.xlu0 %v2041, 24
    %v2126 = vpop.permute.xlu0 %2125
    %2127 = vrot.lane.b32.xlu0 %v2042, 24
    %v2128 = vpop.permute.xlu0 %2127
    %2129 = vrot.lane.b32.xlu0 %v2043, 24
    %v2130 = vpop.permute.xlu0 %2129
    %2131 = vrot.lane.b32.xlu0 %v2044, 24
    %v2132 = vpop.permute.xlu0 %2131
    %v2141 = vsel %vm235, %v669, %v2054
    %v2142 = vsel %vm235, %v670, %v2056
    %v2143 = vsel %vm235, %v671, %v2058
    %v2144 = vsel %vm235, %v672, %v2060
    %v2145 = vsel %vm235, %v673, %v2062
    %v2146 = vsel %vm235, %v674, %v2064
    %v2147 = vsel %vm235, %v675, %v2066
    %v2148 = vsel %vm235, %v676, %v2068
    %vm2149 = vcmask 130048
    %v2150 = vsel %vm2149, %v2141, %v2086
    %v2151 = vsel %vm2149, %v2142, %v2088
    %v2152 = vsel %vm2149, %v2143, %v2090
    %v2153 = vsel %vm2149, %v2144, %v2092
    %v2154 = vsel %vm2149, %v2145, %v2094
    %v2155 = vsel %vm2149, %v2146, %v2096
    %v2156 = vsel %vm2149, %v2147, %v2098
    %v2157 = vsel %vm2149, %v2148, %v2100
    %vm2158 = vcmask 195584
    %v2159 = vsel %vm2158, %v2150, %v2118
    %v2160 = vsel %vm2158, %v2151, %v2120
    %v2161 = vsel %vm2158, %v2152, %v2122
    %v2162 = vsel %vm2158, %v2153, %v2124
    %v2163 = vsel %vm2158, %v2154, %v2126
    %v2164 = vsel %vm2158, %v2155, %v2128
    %v2165 = vsel %vm2158, %v2156, %v2130
    %v2166 = vsel %vm2158, %v2157, %v2132
    %v2167 = vld [vmem:[#allocation11] sm:$0xf]
    %v2168 = vld [vmem:[#allocation11 + $0x4] sm:$0xf]
    %v2169 = vld [vmem:[#allocation11 + $0x8] sm:$0xf]
    %v2170 = vld [vmem:[#allocation11 + $0xc] sm:$0xf]
    %v2171 = vld [vmem:[#allocation11 + $0x10] sm:$0xf]
    %v2172 = vld [vmem:[#allocation11 + $0x14] sm:$0xf]
    %v2173 = vld [vmem:[#allocation11 + $0x18] sm:$0xf]
    %v2174 = vld [vmem:[#allocation11 + $0x1c] sm:$0xf]
    %v2175 = vunpack.c.l.bf16 %v2167
    %v2176 = vunpack.c.l.bf16 %v2168
    %v2177 = vunpack.c.l.bf16 %v2169
    %v2178 = vunpack.c.l.bf16 %v2170
    %v2179 = vunpack.c.l.bf16 %v2171
    %v2180 = vunpack.c.l.bf16 %v2172
    %v2181 = vunpack.c.l.bf16 %v2173
    %v2182 = vunpack.c.l.bf16 %v2174
    %v2183 = vadd.f32 %v2159, %v2175
    %v2184 = vadd.f32 %v2160, %v2176
    %v2185 = vadd.f32 %v2161, %v2177
    %v2186 = vadd.f32 %v2162, %v2178
    %v2187 = vadd.f32 %v2163, %v2179
    %v2188 = vadd.f32 %v2164, %v2180
    %v2189 = vadd.f32 %v2165, %v2181
    %v2190 = vadd.f32 %v2166, %v2182
    %v2191 = vpack.c.bf16 %v2184, %v2183
    %v2192 = vpack.c.bf16 %v2186, %v2185
    %v2193 = vpack.c.bf16 %v2188, %v2187
    %v2194 = vpack.c.bf16 %v2190, %v2189
    %v2195 = vld [vmem:[#allocation8] sm:$0xf]
    %v2196 = vld [vmem:[#allocation8 + $0x4] sm:$0xf]
    %v2197 = vld [vmem:[#allocation8 + $0x8] sm:$0xf]
    %v2198 = vld [vmem:[#allocation8 + $0xc] sm:$0xf]
    %v2199 = vld [vmem:[%s5] sm:$0x1]
    %v2201 = vperm.slane %v2199, 0
    %v2207 = vunpack.c.l.b16 %v2195
    %v2208 = vunpack.c.l.b16 %v2196
    %v2209 = vunpack.c.l.b16 %v2197
    %v2210 = vunpack.c.l.b16 %v2198
    %v2211 = vpack.c.b16 %v2208, %v2207
    %v2212 = vpack.c.b16 %v2210, %v2209
    %v2216 = vsel %vm173, %v2191, 0
    %v2219 = vsel %vm173, %v2192, 0
    %v2222 = vsel %vm173, %v2193, 0
    %v2225 = vsel %vm173, %v2194, 0
    %2227 = vmatpush.bf16.msra.mxu0 0
    %2228 = vmatpush.bf16.msra.mxu0 0
    %2229 = vmatpush.bf16.msra.mxu0 0
    %2230 = vmatpush.bf16.msra.mxu0 0
    %2231 = vmatpush.bf16.msra.mxu0 0
    %2232 = vmatpush.bf16.msra.mxu0 0
    %2233 = vmatpush.bf16.msra.mxu0 %v2212
    %2234 = vmatpush.bf16.msra.mxu0 %v2211
    %2235 = vmatmul.bf16.gmra.mxu0 %v2216
    %v2236 = vpop.f32.mrf.mxu0
    %v2237 = vadd.f32 %v2201, %v2236
    %v2238 = vpop.f32.mrf.mxu0
    %v2239 = vadd.f32 %v2201, %v2238
    %2240 = vmatmul.bf16.gmra.mxu0 %v2219
    %v2241 = vpop.f32.mrf.mxu0
    %v2242 = vadd.f32 %v2201, %v2241
    %v2243 = vpop.f32.mrf.mxu0
    %v2244 = vadd.f32 %v2201, %v2243
    %2245 = vmatmul.bf16.gmra.mxu0 %v2222
    %v2246 = vpop.f32.mrf.mxu0
    %v2247 = vadd.f32 %v2201, %v2246
    %v2248 = vpop.f32.mrf.mxu0
    %v2249 = vadd.f32 %v2201, %v2248
    %2250 = vmatmul.bf16.gmra.mxu0 %v2225
    %v2251 = vpop.f32.mrf.mxu0
    %v2252 = vadd.f32 %v2201, %v2251
    %v2253 = vpop.f32.mrf.mxu0
    %v2254 = vadd.f32 %v2201, %v2253
    %2255 = vdwg.mxu0
    %2256 = vst.msk [vmem:[#allocation13] sm:$0xff] %vm173, %v2237
    %2257 = vst.msk [vmem:[#allocation13 + $0x8] sm:$0xff] %vm173, %v2239
    %2258 = vst.msk [vmem:[#allocation13 + $0x10] sm:$0xff] %vm173, %v2242
    %2259 = vst.msk [vmem:[#allocation13 + $0x18] sm:$0xff] %vm173, %v2244
    %2260 = vst.msk [vmem:[#allocation13 + $0x20] sm:$0xff] %vm173, %v2247
    %2261 = vst.msk [vmem:[#allocation13 + $0x28] sm:$0xff] %vm173, %v2249
    %2262 = vst.msk [vmem:[#allocation13 + $0x30] sm:$0xff] %vm173, %v2252
    %2263 = vst.msk [vmem:[#allocation13 + $0x38] sm:$0xff] %vm173, %v2254
    // Predicated region
    $region58: #{tpu_custom_call.1} parent=1 // pred_check
      _
    $region59: #{tpu_custom_call.1} parent=1 // pred_check_branch
      %2265 = sbr.rel (0) target = $region61
    $region60: #{tpu_custom_call.1} parent=1 // pred_region
      %2267 = vsyncadd [#allocation4], 0
      %s2268 = sshll.u32 [#allocation13], 4
      %s2269 = int_to_ptr.vmem [resolvable:$true] %s2268
      %s2270 = sshll.u32 %s8, 4
      %s2271 = int_to_ptr.hbm [resolvable:$true] %s2270
      %2276 = dma.vmem_to_hbm [thread:$0]  %s2269, 1024, %s2271, [#allocation4], 128, 128, 8
    $region61: #{tpu_custom_call.1} parent=1 // pred_fallthru
      _
    // Predicated region
    $region62: #{tpu_custom_call.1} parent=1 // pred_check
      _
    $region63: #{tpu_custom_call.1} parent=1 // pred_check_branch
      %2278 = sbr.rel (0) target = $region65
    $region64: #{tpu_custom_call.1} parent=1 // pred_region
      %2280 = dma.done [#allocation4], 1024
    $region65: #{tpu_custom_call.1} parent=1 // pred_fallthru
      _
    %2281 = vsyncpa [#allocation3], 1
    %2282 = vsyncpa [#allocation6], 1
    %2283 = vsyncpa [#allocation9], 1
    %2284 = vsyncpa [#allocation12], 1
    %2285 = vsyncpa [#allocation4], 1

</llo_original>
